<compile_context>
chip_gen: v7x
topology: tpu7x:2x2x1
jax: 0.10.0
libtpu: 0.0.40
codegen_flags: <defaults>
</compile_context>

<pallas_src>
import jax
import jax.numpy as jnp
from jax.experimental import pallas as pl
from jax.experimental.pallas import tpu as pltpu

E = 8            # user / item embedding dim  (Linear(8, 4096) in the module)
H1, H2 = 32, 64  # MetaNet layers_dim = [32, 64]
D_MODEL = 4096   # llama hidden size (out dim of user_mapping / item_mapping)
KU = 72          # augmented user-path contraction dim: 64 + 1 (bias) + 7 pad
KI = E + 1       # augmented item-path contraction dim: 8 + 1 (bias)


def _round_up(x, m):
    return (x + m - 1) // m * m


def _resident_spec(shape, index_map):
    """Single-buffered BlockSpec for operands whose block never changes."""
    if hasattr(pl, "Buffered"):
        try:
            return pl.BlockSpec(shape, index_map, pipeline_mode=pl.Buffered(1))
        except TypeError:   # older jax without pipeline_mode kwarg
            pass
    return pl.BlockSpec(shape, index_map)


def _net_kernel(pu_ref, uexp_ref, item_ref,
                w1_ref, b1_ref, w2_ref, b2_ref,
                wuf_ref, wim_ref,
                out_user_ref, out_item_ref):
    # ---------------- MetaNet (f32): Linear(8,32) -> ReLU -> Linear(32,72) --
    # w2/b2 are zero-padded 64->72 with b2[:, 64] == 1, so wu_flat[:, 64] == 1
    # carries the user-mapping bias through the fused matmul below.
    pu = pu_ref[...]                                              # (TB, E)
    h1 = jnp.maximum(
        jnp.dot(pu, w1_ref[...], preferred_element_type=jnp.float32)
        + b1_ref[...], 0.0)                                       # (TB, H1)
    wu_flat = (jnp.dot(h1, w2_ref[...], preferred_element_type=jnp.float32)
               + b2_ref[...])                                     # (TB, KU)

    # ---------------- personal_mapping + user_mapping (+bias), fused --------
    #   personal[b, j] = sum_k u[b, k] * wu_flat[b, k*8 + j]
    #   user_out       = personal @ W_um + b_um
    # With uexp[b, k*8+j] = u[b, k], uexp[b, 64] = 1, W_uf[k*8+j,:] = W_um[j,:]
    # and W_uf[64,:] = b_um (all precomputed), this is one K=72 matmul:
    prod = (uexp_ref[...] * wu_flat).astype(jnp.bfloat16)         # (TB, KU)
    out_user_ref[...] = jnp.dot(
        prod, wuf_ref[...],
        preferred_element_type=jnp.float32).astype(out_user_ref.dtype)

    # ---------------- item_mapping (Linear 8 -> 4096, bias as K row 8) ------
    out_item_ref[...] = jnp.dot(
        item_ref[...], wim_ref[...],
        preferred_element_type=jnp.float32).astype(out_item_ref.dtype)


def prepare_mapping_params(params):
    """One-time parameter preprocessing (hoisted out of the forward call):

    * pad the MetaNet second layer 64 -> 72 columns, with b2[:, 64] = 1 so the
      fused user matmul picks up the user_mapping bias,
    * build W_uf (72, D): rows k*8+j = w_user_map[j], row 64 = b_user_map,
    * build W_im (9, D): rows 0..7 = w_item_map, row 8 = b_item_map,
    * cast the big mapping weights to bf16 (MXU native)."""
    f32 = jnp.float32
    w2 = params["w2"].astype(f32)
    b2 = params["b2"].astype(f32)
    w2a = jnp.concatenate([w2, jnp.zeros((H1, KU - H2), f32)], axis=1)      # (32,72)
    b2a = jnp.concatenate([b2, jnp.ones((1, 1), f32),
                           jnp.zeros((1, KU - H2 - 1), f32)], axis=1)       # (1,72)
    w_uf = jnp.concatenate(
        [jnp.tile(params["w_user_map"].astype(f32), (E, 1)),                # (64,D)
         params["b_user_map"].reshape(1, D_MODEL).astype(f32),              # (1,D)
         jnp.zeros((KU - H2 - 1, D_MODEL), f32)], axis=0).astype(jnp.bfloat16)
    w_im = jnp.concatenate(
        [params["w_item_map"].astype(f32),
         params["b_item_map"].reshape(1, D_MODEL).astype(f32)],
        axis=0).astype(jnp.bfloat16)                                         # (9,D)
    return {"w1": params["w1"].astype(f32), "b1": params["b1"].astype(f32),
            "w2": w2a, "b2": b2a, "w_uf": w_uf, "w_im": w_im}


def personal_and_item_mapping(hist_emb, user_emb, cand_item_emb, prep, tb=512):
    """hist_emb: (B, L, E) f32; user_emb: (B, E) f32; cand_item_emb: (B, E) f32.

    `prep` is the output of prepare_mapping_params (call it once, not per step).
    Returns (user_mapped, item_mapped), each (B, D_MODEL) bf16."""
    B = hist_emb.shape[0]
    f32 = jnp.float32

    # history mean in the wrapper (fuses into the gather); kernel gets (B, E)
    pu = jnp.mean(hist_emb, axis=1).astype(f32)                    # (B, E)
    # fused-user-matmul LHS: repeat(u, 8) plus a ones column at index 64
    u_exp = jnp.repeat(user_emb.astype(f32), E, axis=-1)           # (B, 64)
    u_exp = jnp.concatenate(
        [u_exp, jnp.ones((B, 1), f32),
         jnp.zeros((B, KU - H2 - 1), f32)], axis=1)                # (B, 72)
    # item matmul LHS with a ones column for the bias row
    item = jnp.concatenate(
        [cand_item_emb.astype(f32), jnp.ones((B, 1), f32)],
        axis=1).astype(jnp.bfloat16)                               # (B, 9)

    # batch tile: multiple of 8 sublanes, up to `tb` rows per grid step.
    # Per-step VMEM ~= TB * 32 KB (two bf16 outputs, double-buffered), so
    # TB=512 (~17 MB) fits v6e/v7x; v5e needs the raised vmem limit below.
    TB = min(tb, _round_up(B, 8))
    Bp = _round_up(B, TB)
    pad = Bp - B
    if pad:
        pu = jnp.pad(pu, ((0, pad), (0, 0)))
        u_exp = jnp.pad(u_exp, ((0, pad), (0, 0)))
        item = jnp.pad(item, ((0, pad), (0, 0)))

    nb = Bp // TB
    # If the batch grid has a single step, split d_model in two so a 2-TC chip
    # (v7x) keeps both cores busy; harmless (one extra small weight fetch) on
    # single-TC chips.
    nn = 2 if (nb == 1 and D_MODEL % 256 == 0) else 1
    TN = D_MODEL // nn

    w1, b1, w2, b2 = prep["w1"], prep["b1"], prep["w2"], prep["b2"]
    w_uf, w_im = prep["w_uf"], prep["w_im"]

    row_spec = lambda shp: pl.BlockSpec(shp, lambda i, j: (i, 0))
    const_spec = lambda a: _resident_spec(a.shape, lambda i, j: (0, 0))
    if nn == 1:
        big_w_spec = lambda a: _resident_spec(a.shape, lambda i, j: (0, 0))
    else:
        big_w_spec = lambda a: pl.BlockSpec((a.shape[0], TN), lambda i, j: (0, j))
    out_spec = pl.BlockSpec((TB, TN), lambda i, j: (i, j))

    # VMEM budget: double-buffered outputs/row-inputs + (<=2x) resident weights
    vmem_need = (2 * 2 * TB * TN * 2
                 + 2 * TB * (E * 4 + KU * 4 + KI * 2)
                 + 2 * (KU + KI) * TN * 2
                 + (1 << 20))
    vmem_limit = int(min(48 << 20, max(24 << 20, vmem_need * 5 // 4)))

    flops = 2 * Bp * (KU + KI) * D_MODEL + 2 * Bp * (E * H1 + H1 * KU)
    bytes_accessed = (2 * Bp * D_MODEL * 2                       # bf16 outputs
                      + Bp * (E * 4 + KU * 4 + KI * 2)           # row inputs
                      + nn * (KU + KI) * D_MODEL * 2)            # weights

    out_user, out_item = pl.pallas_call(
        _net_kernel,
        grid=(nb, nn),
        in_specs=[
            row_spec((TB, E)),        # pu
            row_spec((TB, KU)),       # u_exp (with bias ones column)
            row_spec((TB, KI)),       # candidate item emb (bf16, ones column)
            const_spec(w1), const_spec(b1), const_spec(w2), const_spec(b2),
            big_w_spec(w_uf), big_w_spec(w_im),
        ],
        out_specs=(out_spec, out_spec),
        out_shape=(jax.ShapeDtypeStruct((Bp, D_MODEL), jnp.bfloat16),
                   jax.ShapeDtypeStruct((Bp, D_MODEL), jnp.bfloat16)),
        compiler_params=pltpu.CompilerParams(
            dimension_semantics=("parallel", "parallel"),
            vmem_limit_bytes=vmem_limit),
        cost_estimate=pl.CostEstimate(flops=flops, transcendentals=0,
                                      bytes_accessed=bytes_accessed),
    )(pu, u_exp, item, w1, b1, w2, b2, w_uf, w_im)

    return out_user[:B], out_item[:B]


def _place_unk_embeds(input_embeds, input_ids, user_mapped, item_mapped, max_unk=8):
    """First <unk> (id == 0) slot <- user_mapped, later <unk>s <- item_mapped.

    Positional scatter over at most `max_unk` <unk> slots per row (the module's
    common case is exactly 2) instead of two full (B,S,D) where-passes."""
    B, S = input_ids.shape
    is_unk = input_ids == 0
    # <unk> column indices packed to the front of each row, original order kept
    pos = jnp.argsort((~is_unk).astype(jnp.int32), axis=1, stable=True)   # (B,S)
    count = jnp.sum(is_unk, axis=1)                                       # (B,)
    rows = jnp.arange(B)
    user_v = user_mapped.astype(input_embeds.dtype)
    item_v = item_mapped.astype(input_embeds.dtype)
    out = input_embeds
    for k in range(min(max_unk, S)):
        col = jnp.where(k < count, pos[:, k], S)     # OOB column -> update dropped
        out = out.at[rows, col].set(user_v if k == 0 else item_v, mode="drop")
    return out


def net_forward(input_ids, token_emb_table, user_ids, candidate_items,
                user_sequences, user_emb_table, item_emb_table, prep):
    """Data-branch (data_type != 1) of Net.forward, minus the llama call."""
    # model.get_input_embeddings()(input_ids)  -- plain gather (glue)
    input_embeds = token_emb_table[input_ids].astype(jnp.bfloat16)   # (B,S,D)

    # per-user history gathers (glue); seq[0] is the user id, seq[1:-1] history
    seqs = user_sequences[user_ids]                       # (B, L_SEQ)
    hist_ids = seqs[:, 1:-1]                              # (B, L_HIST)
    hist_emb = item_emb_table[hist_ids]                   # (B, L_HIST, E)
    u_emb = user_emb_table[seqs[:, 0]]                    # (B, E)
    cand_emb = item_emb_table[candidate_items]            # (B, E)

    user_mapped, item_mapped = personal_and_item_mapping(
        hist_emb, u_emb, cand_emb, prep)                  # (B, D) bf16 each

    # place mapped embeds at <unk> (id == 0) positions (covers ==2 and !=2
    # branches: first <unk> <- user, later <unk>s <- item)
    out = _place_unk_embeds(input_embeds, input_ids, user_mapped, item_mapped)

    # TODO(synk): output2 = self.model(inputs_embeds=out, ...); loss/logits
    # require the pretrained llama model and are not reproduced here.
    return out, user_mapped, item_mapped


def _reference_mapping(hist_emb, user_emb, cand_item_emb, params):
    """Pure-JAX reference mirroring the PyTorch math (for validation)."""
    pu = jnp.mean(hist_emb, axis=1)                                    # (B, E)
    h1 = jnp.maximum(pu @ params["w1"] + params["b1"], 0.0)            # (B, 32)
    wu = (h1 @ params["w2"] + params["b2"]).reshape(-1, E, E)          # (B, 8, 8)
    personal = jnp.einsum("be,bef->bf", user_emb, wu)                  # (B, E)
    user_mapped = personal @ params["w_user_map"] + params["b_user_map"]
    item_mapped = cand_item_emb @ params["w_item_map"] + params["b_item_map"]
    return user_mapped.astype(jnp.bfloat16), item_mapped.astype(jnp.bfloat16)


if __name__ == "__main__":
    B, S = 2, 16          # batch, sequence length
    L_SEQ = 8             # stored user sequence length -> history length 6
    N_USERS, N_ITEMS, VOCAB = 16, 32, 64

    key = jax.random.PRNGKey(0)
    ks = jax.random.split(key, 12)

    # embedding tables (stand-ins for the pretrained user/item/token tables)
    user_emb_table = jax.random.normal(ks[0], (N_USERS, E), jnp.float32) * 0.1
    item_emb_table = jax.random.normal(ks[1], (N_ITEMS, E), jnp.float32) * 0.1
    token_emb_table = jax.random.normal(ks[2], (VOCAB, D_MODEL), jnp.float32) * 0.02

    # deterministic parameters (shapes from __init__)
    params = {
        "w1": jax.random.normal(ks[3], (E, H1), jnp.float32) * 0.2,          # MetaNet L1
        "b1": jax.random.normal(ks[4], (1, H1), jnp.float32) * 0.05,
        "w2": jax.random.normal(ks[5], (H1, H2), jnp.float32) * 0.2,          # MetaNet L2
        "b2": jax.random.normal(ks[6], (1, H2), jnp.float32) * 0.05,
        "w_user_map": jax.random.normal(ks[7], (E, D_MODEL), jnp.float32) * 0.2,
        "b_user_map": jax.random.normal(ks[8], (1, D_MODEL), jnp.float32) * 0.05,
        "w_item_map": jax.random.normal(ks[9], (E, D_MODEL), jnp.float32) * 0.2,
        "b_item_map": jax.random.normal(ks[10], (1, D_MODEL), jnp.float32) * 0.05,
    }
    prep = prepare_mapping_params(params)   # one-time weight prep (hoisted)

    # user_sequences: seq[0] = user id, seq[1:-1] = item history, seq[-1] = target
    user_sequences = jax.random.randint(ks[11], (N_USERS, L_SEQ), 0, N_ITEMS)
    user_sequences = user_sequences.at[:, 0].set(jnp.arange(N_USERS))
    user_sequences = user_sequences.astype(jnp.int32)

    user_ids = jnp.array([3, 7], dtype=jnp.int32)
    candidate_items = jnp.array([5, 21], dtype=jnp.int32)

    # input_ids with two <unk> tokens (id == 0) per row
    input_ids = jax.random.randint(jax.random.PRNGKey(1), (B, S), 1, VOCAB)
    input_ids = input_ids.at[0, 3].set(0).at[0, 10].set(0)
    input_ids = input_ids.at[1, 5].set(0).at[1, 12].set(0)
    input_ids = input_ids.astype(jnp.int32)

    out_embeds, user_mapped, item_mapped = net_forward(
        input_ids, token_emb_table, user_ids, candidate_items,
        user_sequences, user_emb_table, item_emb_table, prep)
    jax.block_until_ready((out_embeds, user_mapped, item_mapped))

    # validate the kernel against a pure-JAX reference
    seqs = user_sequences[user_ids]
    ref_user, ref_item = _reference_mapping(
        item_emb_table[seqs[:, 1:-1]], user_emb_table[seqs[:, 0]],
        item_emb_table[candidate_items], params)
    assert jnp.allclose(user_mapped.astype(jnp.float32),
                        ref_user.astype(jnp.float32), rtol=2e-2, atol=5e-3)
    assert jnp.allclose(item_mapped.astype(jnp.float32),
                        ref_item.astype(jnp.float32), rtol=2e-2, atol=5e-3)

    # validate the <unk> scatter (first <unk> <- user, later <unk> <- item)
    assert jnp.allclose(out_embeds[0, 3].astype(jnp.float32),
                        user_mapped[0].astype(jnp.float32))
    assert jnp.allclose(out_embeds[0, 10].astype(jnp.float32),
                        item_mapped[0].astype(jnp.float32))
    assert jnp.allclose(out_embeds[1, 5].astype(jnp.float32),
                        user_mapped[1].astype(jnp.float32))
    assert jnp.allclose(out_embeds[1, 12].astype(jnp.float32),
                        item_mapped[1].astype(jnp.float32))
    assert out_embeds.shape == (B, S, D_MODEL) and out_embeds.dtype == jnp.bfloat16

    print("KERNEL_OK")
</pallas_src>

<mosaic_0001>
module attributes {stable_mosaic.version = 11 : i64} {
  func.func @_net_kernel(%arg0: i32, %arg1: i32, %arg2: memref<8x8xf32, #tpu.memory_space<vmem>>, %arg3: memref<8x72xf32, #tpu.memory_space<vmem>>, %arg4: memref<8x9xbf16, #tpu.memory_space<vmem>>, %arg5: memref<8x32xf32, #tpu.memory_space<vmem>>, %arg6: memref<1x32xf32, #tpu.memory_space<vmem>>, %arg7: memref<32x72xf32, #tpu.memory_space<vmem>>, %arg8: memref<1x72xf32, #tpu.memory_space<vmem>>, %arg9: memref<72x2048xbf16, #tpu.memory_space<vmem>>, %arg10: memref<9x2048xbf16, #tpu.memory_space<vmem>>, %arg11: memref<8x2048xbf16, #tpu.memory_space<vmem>>, %arg12: memref<8x2048xbf16, #tpu.memory_space<vmem>>) attributes {dimension_semantics = [#tpu.dimension_semantics<parallel>, #tpu.dimension_semantics<parallel>], iteration_bounds = array<i64: 1, 2>, scalar_prefetch = 0 : i64, scratch_operands = 0 : i64, tpu.core_type = #tpu.core_type<tc>, window_params = [{transform_indices = @transform_0, window_bounds = array<i64: 8, 8>}, {transform_indices = @transform_1, window_bounds = array<i64: 8, 72>}, {transform_indices = @transform_2, window_bounds = array<i64: 8, 9>}, {pipeline_mode = #tpu.pipeline_mode<synchronous>, transform_indices = @transform_3, window_bounds = array<i64: 8, 32>}, {pipeline_mode = #tpu.pipeline_mode<synchronous>, transform_indices = @transform_4, window_bounds = array<i64: 1, 32>}, {pipeline_mode = #tpu.pipeline_mode<synchronous>, transform_indices = @transform_5, window_bounds = array<i64: 32, 72>}, {pipeline_mode = #tpu.pipeline_mode<synchronous>, transform_indices = @transform_6, window_bounds = array<i64: 1, 72>}, {transform_indices = @transform_7, window_bounds = array<i64: 72, 2048>}, {transform_indices = @transform_8, window_bounds = array<i64: 9, 2048>}, {transform_indices = @transform_9, window_bounds = array<i64: 8, 2048>}, {transform_indices = @transform_10, window_bounds = array<i64: 8, 2048>}]} {
    %c0 = arith.constant 0 : index
    %c0_0 = arith.constant 0 : index
    %0 = vector.load %arg2[%c0, %c0_0] : memref<8x8xf32, #tpu.memory_space<vmem>>, vector<8x8xf32>
    %c0_1 = arith.constant 0 : index
    %c0_2 = arith.constant 0 : index
    %1 = vector.load %arg5[%c0_1, %c0_2] : memref<8x32xf32, #tpu.memory_space<vmem>>, vector<8x32xf32>
    %cst = arith.constant dense<0.000000e+00> : vector<8x32xf32>
    %2 = tpu.matmul %0, %1, %cst {dimension_numbers = #tpu.dot_dimension_numbers<[1], [0], [0], [1], [0, 0, 1, 1], [], []>} : vector<8x8xf32>, vector<8x32xf32>, vector<8x32xf32> -> vector<8x32xf32>
    %c0_3 = arith.constant 0 : index
    %c0_4 = arith.constant 0 : index
    %3 = vector.load %arg6[%c0_3, %c0_4] : memref<1x32xf32, #tpu.memory_space<vmem>>, vector<1x32xf32>
    %4 = vector.broadcast %3 : vector<1x32xf32> to vector<8x32xf32>
    %5 = arith.addf %2, %4 : vector<8x32xf32>
    %cst_5 = arith.constant 0.000000e+00 : f32
    %6 = vector.broadcast %cst_5 : f32 to vector<8x32xf32>
    %7 = arith.maximumf %5, %6 : vector<8x32xf32>
    %c0_6 = arith.constant 0 : index
    %c0_7 = arith.constant 0 : index
    %8 = vector.load %arg7[%c0_6, %c0_7] : memref<32x72xf32, #tpu.memory_space<vmem>>, vector<32x72xf32>
    %cst_8 = arith.constant dense<0.000000e+00> : vector<8x72xf32>
    %9 = tpu.matmul %7, %8, %cst_8 {dimension_numbers = #tpu.dot_dimension_numbers<[1], [0], [0], [1], [0, 0, 1, 1], [], []>} : vector<8x32xf32>, vector<32x72xf32>, vector<8x72xf32> -> vector<8x72xf32>
    %c0_9 = arith.constant 0 : index
    %c0_10 = arith.constant 0 : index
    %10 = vector.load %arg8[%c0_9, %c0_10] : memref<1x72xf32, #tpu.memory_space<vmem>>, vector<1x72xf32>
    %11 = vector.broadcast %10 : vector<1x72xf32> to vector<8x72xf32>
    %12 = arith.addf %9, %11 : vector<8x72xf32>
    %c0_11 = arith.constant 0 : index
    %c0_12 = arith.constant 0 : index
    %13 = vector.load %arg3[%c0_11, %c0_12] : memref<8x72xf32, #tpu.memory_space<vmem>>, vector<8x72xf32>
    %14 = arith.mulf %13, %12 : vector<8x72xf32>
    %15 = arith.truncf %14 : vector<8x72xf32> to vector<8x72xbf16>
    %c0_13 = arith.constant 0 : index
    %c0_14 = arith.constant 0 : index
    %16 = vector.load %arg9[%c0_13, %c0_14] : memref<72x2048xbf16, #tpu.memory_space<vmem>>, vector<72x2048xbf16>
    %cst_15 = arith.constant dense<0.000000e+00> : vector<8x2048xf32>
    %17 = tpu.matmul %15, %16, %cst_15 {dimension_numbers = #tpu.dot_dimension_numbers<[1], [0], [0], [1], [0, 0, 1, 1], [], []>} : vector<8x72xbf16>, vector<72x2048xbf16>, vector<8x2048xf32> -> vector<8x2048xf32>
    %18 = arith.truncf %17 : vector<8x2048xf32> to vector<8x2048xbf16>
    %c0_16 = arith.constant 0 : index
    %c0_17 = arith.constant 0 : index
    %19 = vector.load %arg11[%c0_16, %c0_17] : memref<8x2048xbf16, #tpu.memory_space<vmem>>, vector<8x2048xbf16>
    tpu.vector_store %arg11[%c0_16, %c0_17], %18 {strides = array<i32>} : memref<8x2048xbf16, #tpu.memory_space<vmem>>, vector<8x2048xbf16>,
    %c0_18 = arith.constant 0 : index
    %c0_19 = arith.constant 0 : index
    %20 = vector.load %arg4[%c0_18, %c0_19] : memref<8x9xbf16, #tpu.memory_space<vmem>>, vector<8x9xbf16>
    %c0_20 = arith.constant 0 : index
    %c0_21 = arith.constant 0 : index
    %21 = vector.load %arg10[%c0_20, %c0_21] : memref<9x2048xbf16, #tpu.memory_space<vmem>>, vector<9x2048xbf16>
    %cst_22 = arith.constant dense<0.000000e+00> : vector<8x2048xf32>
    %22 = tpu.matmul %20, %21, %cst_22 {dimension_numbers = #tpu.dot_dimension_numbers<[1], [0], [0], [1], [0, 0, 1, 1], [], []>} : vector<8x9xbf16>, vector<9x2048xbf16>, vector<8x2048xf32> -> vector<8x2048xf32>
    %23 = arith.truncf %22 : vector<8x2048xf32> to vector<8x2048xbf16>
    %c0_23 = arith.constant 0 : index
    %c0_24 = arith.constant 0 : index
    %24 = vector.load %arg12[%c0_23, %c0_24] : memref<8x2048xbf16, #tpu.memory_space<vmem>>, vector<8x2048xbf16>
    tpu.vector_store %arg12[%c0_23, %c0_24], %23 {strides = array<i32>} : memref<8x2048xbf16, #tpu.memory_space<vmem>>, vector<8x2048xbf16>,
    return
  }
  func.func @transform_0(%arg0: i32, %arg1: i32) -> (i32, i32) {
    %c0_i32 = arith.constant 0 : i32
    %c0_i32_0 = arith.constant 0 : i32
    return %arg0, %c0_i32 : i32, i32
  }
  func.func @transform_1(%arg0: i32, %arg1: i32) -> (i32, i32) {
    %c0_i32 = arith.constant 0 : i32
    %c0_i32_0 = arith.constant 0 : i32
    return %arg0, %c0_i32 : i32, i32
  }
  func.func @transform_2(%arg0: i32, %arg1: i32) -> (i32, i32) {
    %c0_i32 = arith.constant 0 : i32
    %c0_i32_0 = arith.constant 0 : i32
    return %arg0, %c0_i32 : i32, i32
  }
  func.func @transform_3(%arg0: i32, %arg1: i32) -> (i32, i32) {
    %c0_i32 = arith.constant 0 : i32
    %c0_i32_0 = arith.constant 0 : i32
    %c0_i32_1 = arith.constant 0 : i32
    return %c0_i32, %c0_i32_0 : i32, i32
  }
  func.func @transform_4(%arg0: i32, %arg1: i32) -> (i32, i32) {
    %c0_i32 = arith.constant 0 : i32
    %c0_i32_0 = arith.constant 0 : i32
    %c0_i32_1 = arith.constant 0 : i32
    return %c0_i32, %c0_i32_0 : i32, i32
  }
  func.func @transform_5(%arg0: i32, %arg1: i32) -> (i32, i32) {
    %c0_i32 = arith.constant 0 : i32
    %c0_i32_0 = arith.constant 0 : i32
    %c0_i32_1 = arith.constant 0 : i32
    return %c0_i32, %c0_i32_0 : i32, i32
  }
  func.func @transform_6(%arg0: i32, %arg1: i32) -> (i32, i32) {
    %c0_i32 = arith.constant 0 : i32
    %c0_i32_0 = arith.constant 0 : i32
    %c0_i32_1 = arith.constant 0 : i32
    return %c0_i32, %c0_i32_0 : i32, i32
  }
  func.func @transform_7(%arg0: i32, %arg1: i32) -> (i32, i32) {
    %c0_i32 = arith.constant 0 : i32
    %c0_i32_0 = arith.constant 0 : i32
    return %c0_i32, %arg1 : i32, i32
  }
  func.func @transform_8(%arg0: i32, %arg1: i32) -> (i32, i32) {
    %c0_i32 = arith.constant 0 : i32
    %c0_i32_0 = arith.constant 0 : i32
    return %c0_i32, %arg1 : i32, i32
  }
  func.func @transform_9(%arg0: i32, %arg1: i32) -> (i32, i32) {
    %c0_i32 = arith.constant 0 : i32
    return %arg0, %arg1 : i32, i32
  }
  func.func @transform_10(%arg0: i32, %arg1: i32) -> (i32, i32) {
    %c0_i32 = arith.constant 0 : i32
    return %arg0, %arg1 : i32, i32
  }
}

</mosaic_0001>

<llo_original>
// kernel: tpu_custom_call.1
$region0: #{tpu_custom_call.1}
  #allocation0 [shape = 'u32[]', space=smem, size = 0x4, offset = 0x4, fixed_abs, tag = 'smem constant byte address 0x4 - core index']
  #allocation1 [shape = 'u32[144,128]{1,0:T(1,128)}', space=vmem, size = 0x12000, scoped, tag = 'internal scratch']
  %s0 = inlined_call_operand.hbm [shape: f32[8,8], index: 0, kind: input, shape index: {}]
  %s1 = inlined_call_operand.hbm [shape: f32[8,72], index: 1, kind: input, shape index: {}]
  %s2 = inlined_call_operand.hbm [shape: bf16[8,9], index: 2, kind: input, shape index: {}]
  %s3 = inlined_call_operand.vmem [shape: f32[8,32], index: 3, kind: input, shape index: {}]
  %s4 = inlined_call_operand.vmem [shape: f32[1,32], index: 4, kind: input, shape index: {}]
  %s5 = inlined_call_operand.hbm [shape: f32[32,72], index: 5, kind: input, shape index: {}]
  %s6 = inlined_call_operand.vmem [shape: f32[1,72], index: 6, kind: input, shape index: {}]
  %s7 = inlined_call_operand.hbm [shape: bf16[72,4096], index: 7, kind: input, shape index: {}]
  %s8 = inlined_call_operand.hbm [shape: bf16[9,4096], index: 8, kind: input, shape index: {}]
  %s9 = inlined_call_operand.hbm [shape: bf16[8,4096], index: 9, kind: output, shape index: {0}]
  %s10 = inlined_call_operand.hbm [shape: bf16[8,4096], index: 10, kind: output, shape index: {1}]
  %11 = xla_tuple %s9, %s10
  %s12 = sld [smem:[#allocation0]]
  $region101: #{tpu_custom_call.1} parent=0
    _
  %s14 = ssub.s32 1, %s12
  %s15 = scalar_select 0, %s14, %s12
  $region1: #{tpu_custom_call.1} parent=0
    #allocation2 [shape = 'u8[4096]{0}', space=vmem, size = 0x1000, scoped, tag = 'input window, operand 0, single buffered']
    #allocation3 [shape = 's32[2]{0}', space=sflag, size = 0x8, scoped, tag = 'scoped memory for tpu_custom_call.1']
    #allocation4 [shape = 's32[2]{0}', space=sflag, size = 0x8, scoped, tag = 'scoped memory for tpu_custom_call.1']
    #allocation5 [shape = 'u8[4096]{0}', space=vmem, size = 0x1000, scoped, tag = 'input window, operand 1, single buffered']
    #allocation6 [shape = 's32[1]{0}', space=sflag, size = 0x4, scoped, tag = 'scoped memory for tpu_custom_call.1']
    #allocation7 [shape = 'u8[2048]{0}', space=vmem, size = 0x800, scoped, tag = 'input window, operand 2, single buffered']
    #allocation8 [shape = 'u8[16384]{0}', space=vmem, size = 0x4000, scoped, tag = 'input window, operand 5, single buffered']
    #allocation9 [shape = 's32[1]{0}', space=sflag, size = 0x4, scoped, tag = 'scoped memory for tpu_custom_call.1']
    #allocation10 [shape = 'u8[589824]{0}', space=vmem, size = 0x90000, scoped, tag = 'input window, operand 7']
    #allocation11 [shape = 'u8[131072]{0}', space=vmem, size = 0x20000, scoped, tag = 'input window, operand 8']
    #allocation12 [shape = 'u8[65536]{0}', space=vmem, size = 0x10000, scoped, tag = 'output window, operand 0']
    #allocation13 [shape = 'u8[65536]{0}', space=vmem, size = 0x10000, scoped, tag = 'output window, operand 1']
    #allocation14 [shape = 's32[2]{0}', space=sflag, size = 0x8, scoped, tag = 'scoped memory for tpu_custom_call.1']
    %16 = vsyncpa [#allocation3], 0
    %17 = vsyncpa [#allocation6], 0
    %18 = vsyncpa [#allocation9], 0
    %19 = vsyncpa [#allocation4], 0
    %s20 = scalar_lea.sflag [#allocation4], 1
    %21 = vsyncpa %s20, 0
    %22 = vsyncpa [#allocation14], 0
    %s23 = scalar_lea.sflag [#allocation14], 1
    %24 = vsyncpa %s23, 0
    loop: start=0, step=1, limit=4
    $region2: #{tpu_custom_call.1} parent=1 // loop_pre_header
      _
    $region3: #{tpu_custom_call.1} parent=1 // loop_header
      %s26 = sphi 0, %s30
      %p27 = scmp.ge.s32.totalorder %s26, 4
      %s33 = sphi 0, %s45
      %s34 = sphi 0, %s41
      %s35 = sphi 0, %s33
      %s36 = sphi 0, %s34
      %s37 = sphi 0, %s35
      %s38 = sphi 0, %s36
      %s48 = sphi 0, %s50
      %s51 = sphi 0, %s48
      %s52 = sphi 0, %s51
      %s68 = sphi 0, %s52
      %s74 = sphi 0, %s76
      %s77 = sphi 0, %s74
      %s78 = sphi 0, %s77
      %s94 = sphi 0, %s78
      %s100 = sphi 0, %s102
      %s103 = sphi 0, %s100
      %s104 = sphi 0, %s103
      %s120 = sphi 0, %s104
      %s124 = sphi 0, %s124
      %s126 = sphi 0, %s124
      %s127 = sphi 0, %s126
      %s141 = sphi 0, %s127
      %s145 = sphi 0, %s145
      %s147 = sphi 0, %s145
      %s148 = sphi 0, %s147
      %s162 = sphi 0, %s148
      %s166 = sphi 0, %s166
      %s168 = sphi 0, %s166
      %s169 = sphi 0, %s168
      %s183 = sphi 0, %s169
      %s187 = sphi 0, %s187
      %s189 = sphi 0, %s187
      %s190 = sphi 0, %s189
      %s204 = sphi 0, %s190
      %s210 = sphi 0, %s212
      %s213 = sphi 0, %s210
      %s214 = sphi 0, %s213
      %s230 = sphi 0, %s214
      %s236 = sphi 0, %s238
      %s239 = sphi 0, %s236
      %s240 = sphi 0, %s239
      %s256 = sphi 0, %s240
      %s264 = sphi 0, %s266
      %s267 = sphi 0, %s264
      %s268 = sphi 0, %s267
      %s284 = sphi 0, %s268
      %s292 = sphi 0, %s294
      %s295 = sphi 0, %s292
      %s296 = sphi 0, %s295
      %s312 = sphi 0, %s296
    $region4: #{tpu_custom_call.1} parent=1 // loop_header_branch
      %29 = sbr.rel (%p27) target = $region8
    $region5: #{tpu_custom_call.1} parent=1 // loop_body
      %s31 = ssub.s32 %s26, 1
      %s32 = ssub.s32 %s26, 2
      %s39 = sadd.s32 1, %s34
      %p40 = scmp.ge.s32.totalorder %s39, 2
      %s41 = scalar_select %p40, 0, %s39
      %s42 = sadd.s32 1, %s33
      %s43 = scalar_select %p40, %s42, %s33
      %p44 = scmp.ge.s32.totalorder %s43, 1
      %s45 = scalar_select %p44, 0, %s43
      %s46 = ssub.s32 %s33, %s45
      %p47 = scmp.eq.s32.totalorder %s46, 0
      %s49 = sadd.s32 %s48, 1
      %s50 = scalar_select %p47, %s48, %s49
      %p53 = pneg %p47
      %p54 = scmp.eq.s32.totalorder %s26, 1
      %p55 = por %p53, %p54
      %p56 = scmp.ne.s32.totalorder %s48, %s51
      %p57 = scmp.eq.s32.totalorder %s26, 0
      %p58 = por %p56, %p57
      %p59 = scmp.ne.s32.totalorder %s48, %s51
      %p60 = scmp.eq.s32.totalorder %s31, 1
      %p61 = por %p59, %p60
      %p62 = scmp.ne.s32.totalorder %s51, %s52
      %p63 = scmp.eq.s32.totalorder %s31, 0
      %p64 = por %p62, %p63
      %p65 = scmp.ne.s32.totalorder %s51, %s52
      %p66 = scmp.eq.s32.totalorder %s32, 1
      %p67 = por %p65, %p66
      %p69 = scmp.ne.s32.totalorder %s52, %s68
      %p70 = scmp.eq.s32.totalorder %s32, 0
      %p71 = por %p69, %p70
      %s72 = ssub.s32 %s33, %s45
      %p73 = scmp.eq.s32.totalorder %s72, 0
      %s75 = sadd.s32 %s74, 1
      %s76 = scalar_select %p73, %s74, %s75
      %p79 = pneg %p73
      %p80 = scmp.eq.s32.totalorder %s26, 1
      %p81 = por %p79, %p80
      %p82 = scmp.ne.s32.totalorder %s74, %s77
      %p83 = scmp.eq.s32.totalorder %s26, 0
      %p84 = por %p82, %p83
      %p85 = scmp.ne.s32.totalorder %s74, %s77
      %p86 = scmp.eq.s32.totalorder %s31, 1
      %p87 = por %p85, %p86
      %p88 = scmp.ne.s32.totalorder %s77, %s78
      %p89 = scmp.eq.s32.totalorder %s31, 0
      %p90 = por %p88, %p89
      %p91 = scmp.ne.s32.totalorder %s77, %s78
      %p92 = scmp.eq.s32.totalorder %s32, 1
      %p93 = por %p91, %p92
      %p95 = scmp.ne.s32.totalorder %s78, %s94
      %p96 = scmp.eq.s32.totalorder %s32, 0
      %p97 = por %p95, %p96
      %s98 = ssub.s32 %s33, %s45
      %p99 = scmp.eq.s32.totalorder %s98, 0
      %s101 = sadd.s32 %s100, 1
      %s102 = scalar_select %p99, %s100, %s101
      %p105 = pneg %p99
      %p106 = scmp.eq.s32.totalorder %s26, 1
      %p107 = por %p105, %p106
      %p108 = scmp.ne.s32.totalorder %s100, %s103
      %p109 = scmp.eq.s32.totalorder %s26, 0
      %p110 = por %p108, %p109
      %p111 = scmp.ne.s32.totalorder %s100, %s103
      %p112 = scmp.eq.s32.totalorder %s31, 1
      %p113 = por %p111, %p112
      %p114 = scmp.ne.s32.totalorder %s103, %s104
      %p115 = scmp.eq.s32.totalorder %s31, 0
      %p116 = por %p114, %p115
      %p117 = scmp.ne.s32.totalorder %s103, %s104
      %p118 = scmp.eq.s32.totalorder %s32, 1
      %p119 = por %p117, %p118
      %p121 = scmp.ne.s32.totalorder %s104, %s120
      %p122 = scmp.eq.s32.totalorder %s32, 0
      %p123 = por %p121, %p122
      %s125 = sadd.s32 %s124, 1
      %p128 = scmp.eq.s32.totalorder %s26, 1
      %p129 = scmp.ne.s32.totalorder %s124, %s126
      %p130 = scmp.eq.s32.totalorder %s26, 0
      %p131 = por %p129, %p130
      %p132 = scmp.ne.s32.totalorder %s124, %s126
      %p133 = scmp.eq.s32.totalorder %s31, 1
      %p134 = por %p132, %p133
      %p135 = scmp.ne.s32.totalorder %s126, %s127
      %p136 = scmp.eq.s32.totalorder %s31, 0
      %p137 = por %p135, %p136
      %p138 = scmp.ne.s32.totalorder %s126, %s127
      %p139 = scmp.eq.s32.totalorder %s32, 1
      %p140 = por %p138, %p139
      %p142 = scmp.ne.s32.totalorder %s127, %s141
      %p143 = scmp.eq.s32.totalorder %s32, 0
      %p144 = por %p142, %p143
      %s146 = sadd.s32 %s145, 1
      %p149 = scmp.eq.s32.totalorder %s26, 1
      %p150 = scmp.ne.s32.totalorder %s145, %s147
      %p151 = scmp.eq.s32.totalorder %s26, 0
      %p152 = por %p150, %p151
      %p153 = scmp.ne.s32.totalorder %s145, %s147
      %p154 = scmp.eq.s32.totalorder %s31, 1
      %p155 = por %p153, %p154
      %p156 = scmp.ne.s32.totalorder %s147, %s148
      %p157 = scmp.eq.s32.totalorder %s31, 0
      %p158 = por %p156, %p157
      %p159 = scmp.ne.s32.totalorder %s147, %s148
      %p160 = scmp.eq.s32.totalorder %s32, 1
      %p161 = por %p159, %p160
      %p163 = scmp.ne.s32.totalorder %s148, %s162
      %p164 = scmp.eq.s32.totalorder %s32, 0
      %p165 = por %p163, %p164
      %s167 = sadd.s32 %s166, 1
      %p170 = scmp.eq.s32.totalorder %s26, 1
      %p171 = scmp.ne.s32.totalorder %s166, %s168
      %p172 = scmp.eq.s32.totalorder %s26, 0
      %p173 = por %p171, %p172
      %p174 = scmp.ne.s32.totalorder %s166, %s168
      %p175 = scmp.eq.s32.totalorder %s31, 1
      %p176 = por %p174, %p175
      %p177 = scmp.ne.s32.totalorder %s168, %s169
      %p178 = scmp.eq.s32.totalorder %s31, 0
      %p179 = por %p177, %p178
      %p180 = scmp.ne.s32.totalorder %s168, %s169
      %p181 = scmp.eq.s32.totalorder %s32, 1
      %p182 = por %p180, %p181
      %p184 = scmp.ne.s32.totalorder %s169, %s183
      %p185 = scmp.eq.s32.totalorder %s32, 0
      %p186 = por %p184, %p185
      %s188 = sadd.s32 %s187, 1
      %p191 = scmp.eq.s32.totalorder %s26, 1
      %p192 = scmp.ne.s32.totalorder %s187, %s189
      %p193 = scmp.eq.s32.totalorder %s26, 0
      %p194 = por %p192, %p193
      %p195 = scmp.ne.s32.totalorder %s187, %s189
      %p196 = scmp.eq.s32.totalorder %s31, 1
      %p197 = por %p195, %p196
      %p198 = scmp.ne.s32.totalorder %s189, %s190
      %p199 = scmp.eq.s32.totalorder %s31, 0
      %p200 = por %p198, %p199
      %p201 = scmp.ne.s32.totalorder %s189, %s190
      %p202 = scmp.eq.s32.totalorder %s32, 1
      %p203 = por %p201, %p202
      %p205 = scmp.ne.s32.totalorder %s190, %s204
      %p206 = scmp.eq.s32.totalorder %s32, 0
      %p207 = por %p205, %p206
      %s208 = ssub.s32 %s34, %s41
      %p209 = scmp.eq.s32.totalorder %s208, 0
      %s211 = sadd.s32 %s210, 1
      %s212 = scalar_select %p209, %s210, %s211
      %p215 = pneg %p209
      %p216 = scmp.eq.s32.totalorder %s26, 1
      %p217 = por %p215, %p216
      %p218 = scmp.ne.s32.totalorder %s210, %s213
      %p219 = scmp.eq.s32.totalorder %s26, 0
      %p220 = por %p218, %p219
      %p221 = scmp.ne.s32.totalorder %s210, %s213
      %p222 = scmp.eq.s32.totalorder %s31, 1
      %p223 = por %p221, %p222
      %p224 = scmp.ne.s32.totalorder %s213, %s214
      %p225 = scmp.eq.s32.totalorder %s31, 0
      %p226 = por %p224, %p225
      %p227 = scmp.ne.s32.totalorder %s213, %s214
      %p228 = scmp.eq.s32.totalorder %s32, 1
      %p229 = por %p227, %p228
      %p231 = scmp.ne.s32.totalorder %s214, %s230
      %p232 = scmp.eq.s32.totalorder %s32, 0
      %p233 = por %p231, %p232
      %s234 = ssub.s32 %s34, %s41
      %p235 = scmp.eq.s32.totalorder %s234, 0
      %s237 = sadd.s32 %s236, 1
      %s238 = scalar_select %p235, %s236, %s237
      %p241 = pneg %p235
      %p242 = scmp.eq.s32.totalorder %s26, 1
      %p243 = por %p241, %p242
      %p244 = scmp.ne.s32.totalorder %s236, %s239
      %p245 = scmp.eq.s32.totalorder %s26, 0
      %p246 = por %p244, %p245
      %p247 = scmp.ne.s32.totalorder %s236, %s239
      %p248 = scmp.eq.s32.totalorder %s31, 1
      %p249 = por %p247, %p248
      %p250 = scmp.ne.s32.totalorder %s239, %s240
      %p251 = scmp.eq.s32.totalorder %s31, 0
      %p252 = por %p250, %p251
      %p253 = scmp.ne.s32.totalorder %s239, %s240
      %p254 = scmp.eq.s32.totalorder %s32, 1
      %p255 = por %p253, %p254
      %p257 = scmp.ne.s32.totalorder %s240, %s256
      %p258 = scmp.eq.s32.totalorder %s32, 0
      %p259 = por %p257, %p258
      %s260 = ssub.s32 %s33, %s45
      %s261 = ssub.s32 %s34, %s41
      %s262 = sor.u32 %s260, %s261
      %p263 = scmp.eq.s32.totalorder %s262, 0
      %s265 = sadd.s32 %s264, 1
      %s266 = scalar_select %p263, %s264, %s265
      %p269 = pneg %p263
      %p270 = scmp.eq.s32.totalorder %s26, 1
      %p271 = por %p269, %p270
      %p272 = scmp.ne.s32.totalorder %s264, %s267
      %p273 = scmp.eq.s32.totalorder %s26, 0
      %p274 = por %p272, %p273
      %p275 = scmp.ne.s32.totalorder %s264, %s267
      %p276 = scmp.eq.s32.totalorder %s31, 1
      %p277 = por %p275, %p276
      %p278 = scmp.ne.s32.totalorder %s267, %s268
      %p279 = scmp.eq.s32.totalorder %s31, 0
      %p280 = por %p278, %p279
      %p281 = scmp.ne.s32.totalorder %s267, %s268
      %p282 = scmp.eq.s32.totalorder %s32, 1
      %p283 = por %p281, %p282
      %p285 = scmp.ne.s32.totalorder %s268, %s284
      %p286 = scmp.eq.s32.totalorder %s32, 0
      %p287 = por %p285, %p286
      %s288 = ssub.s32 %s33, %s45
      %s289 = ssub.s32 %s34, %s41
      %s290 = sor.u32 %s288, %s289
      %p291 = scmp.eq.s32.totalorder %s290, 0
      %s293 = sadd.s32 %s292, 1
      %s294 = scalar_select %p291, %s292, %s293
      %p297 = pneg %p291
      %p298 = scmp.eq.s32.totalorder %s26, 1
      %p299 = por %p297, %p298
      %p300 = scmp.ne.s32.totalorder %s292, %s295
      %p301 = scmp.eq.s32.totalorder %s26, 0
      %p302 = por %p300, %p301
      %p303 = scmp.ne.s32.totalorder %s292, %s295
      %p304 = scmp.eq.s32.totalorder %s31, 1
      %p305 = por %p303, %p304
      %p306 = scmp.ne.s32.totalorder %s295, %s296
      %p307 = scmp.eq.s32.totalorder %s31, 0
      %p308 = por %p306, %p307
      %p309 = scmp.ne.s32.totalorder %s295, %s296
      %p310 = scmp.eq.s32.totalorder %s32, 1
      %p311 = por %p309, %p310
      %p313 = scmp.ne.s32.totalorder %s296, %s312
      %p314 = scmp.eq.s32.totalorder %s32, 0
      %p315 = por %p313, %p314
      %p316 = scmp.le.s32.totalorder 1, %s26
      %p317 = scmp.lt.s32.totalorder %s26, 3
      %p318 = pnand %p316, %p317
      %p319 = pneg %p318
      // Predicated region
      $region9: #{tpu_custom_call.1} parent=5 // pred_check
        _
      $region10: #{tpu_custom_call.1} parent=5 // pred_check_branch
        %321 = sbr.rel (%p318) target = $region12
      $region11: #{tpu_custom_call.1} parent=5 // pred_region
        %s322 = ssub.s32 %s26, 1
        // Predicated region
        $region13: #{tpu_custom_call.1} parent=11 // pred_check
          %p323 = pneg %p64
        $region14: #{tpu_custom_call.1} parent=11 // pred_check_branch
          %325 = sbr.rel (%p323) target = $region16
        $region15: #{tpu_custom_call.1} parent=11 // pred_region
          %s327 = ssub.s32 128, 128
          %328 = vsyncadd [#allocation3], %s327
          %s329 = smul.addr %s35, 128
          %s330 = scalar_lea.hbm %s0, %s329
          %s332 = sshll.u32 [#allocation2], 4
          %s333 = int_to_ptr.vmem [resolvable:$true] %s332
          %335 = dma.hbm_to_vmem [thread:$0]  %s330, 128, %s333, [#allocation3]
        $region16: #{tpu_custom_call.1} parent=11 // pred_fallthru
          _
        // Predicated region
        $region17: #{tpu_custom_call.1} parent=11 // pred_check
          %p336 = pneg %p90
        $region18: #{tpu_custom_call.1} parent=11 // pred_check_branch
          %338 = sbr.rel (%p336) target = $region20
        $region19: #{tpu_custom_call.1} parent=11 // pred_region
          %s340 = ssub.s32 128, 128
          %341 = vsyncadd [#allocation6], %s340
          %s342 = smul.addr %s35, 128
          %s343 = scalar_lea.hbm %s1, %s342
          %s345 = sshll.u32 [#allocation5], 4
          %s346 = int_to_ptr.vmem [resolvable:$true] %s345
          %348 = dma.hbm_to_vmem [thread:$0]  %s343, 128, %s346, [#allocation6]
        $region20: #{tpu_custom_call.1} parent=11 // pred_fallthru
          _
        // Predicated region
        $region21: #{tpu_custom_call.1} parent=11 // pred_check
          %p349 = pneg %p116
        $region22: #{tpu_custom_call.1} parent=11 // pred_check_branch
          %351 = sbr.rel (%p349) target = $region24
        $region23: #{tpu_custom_call.1} parent=11 // pred_region
          %s353 = ssub.s32 64, 64
          %354 = vsyncadd [#allocation6], %s353
          %s355 = smul.addr %s35, 64
          %s356 = scalar_lea.hbm %s2, %s355
          %s358 = sshll.u32 [#allocation7], 4
          %s359 = int_to_ptr.vmem [resolvable:$true] %s358
          %361 = dma.hbm_to_vmem [thread:$0]  %s356, 64, %s359, [#allocation6]
        $region24: #{tpu_custom_call.1} parent=11 // pred_fallthru
          _
        // Predicated region
        $region25: #{tpu_custom_call.1} parent=11 // pred_check
          %p362 = pneg %p137
        $region26: #{tpu_custom_call.1} parent=11 // pred_check_branch
          %364 = sbr.rel (%p362) target = $region28
        $region27: #{tpu_custom_call.1} parent=11 // pred_region
          _
        $region28: #{tpu_custom_call.1} parent=11 // pred_fallthru
          _
        // Predicated region
        $region29: #{tpu_custom_call.1} parent=11 // pred_check
          %p365 = pneg %p158
        $region30: #{tpu_custom_call.1} parent=11 // pred_check_branch
          %367 = sbr.rel (%p365) target = $region32
        $region31: #{tpu_custom_call.1} parent=11 // pred_region
          _
        $region32: #{tpu_custom_call.1} parent=11 // pred_fallthru
          _
        // Predicated region
        $region33: #{tpu_custom_call.1} parent=11 // pred_check
          %p368 = pneg %p179
        $region34: #{tpu_custom_call.1} parent=11 // pred_check_branch
          %370 = sbr.rel (%p368) target = $region36
        $region35: #{tpu_custom_call.1} parent=11 // pred_region
          %s372 = ssub.s32 512, 512
          %373 = vsyncadd [#allocation9], %s372
          %s374 = sshll.u32 [#allocation8], 4
          %s375 = int_to_ptr.vmem [resolvable:$true] %s374
          %380 = dma.hbm_to_vmem [thread:$0]  %s5, 512, %s375, [#allocation9], 128, 128, 8
        $region36: #{tpu_custom_call.1} parent=11 // pred_fallthru
          _
        // Predicated region
        $region37: #{tpu_custom_call.1} parent=11 // pred_check
          %p381 = pneg %p200
        $region38: #{tpu_custom_call.1} parent=11 // pred_check_branch
          %383 = sbr.rel (%p381) target = $region40
        $region39: #{tpu_custom_call.1} parent=11 // pred_region
          _
        $region40: #{tpu_custom_call.1} parent=11 // pred_fallthru
          _
      $region12: #{tpu_custom_call.1} parent=5 // pred_fallthru
        _
      %p384 = scmp.lt.s32.totalorder %s26, 2
      // Predicated region
      $region41: #{tpu_custom_call.1} parent=5 // pred_check
        %p385 = pneg %p384
      $region42: #{tpu_custom_call.1} parent=5 // pred_check_branch
        %387 = sbr.rel (%p385) target = $region44
      $region43: #{tpu_custom_call.1} parent=5 // pred_region
        // Predicated region
        $region45: #{tpu_custom_call.1} parent=43 // pred_check
          %p388 = pneg %p220
        $region46: #{tpu_custom_call.1} parent=43 // pred_check_branch
          %390 = sbr.rel (%p388) target = $region48
        $region47: #{tpu_custom_call.1} parent=43 // pred_region
          %s391 = sand.u32 %s26, 1
          %s392 = scalar_lea.sflag [#allocation3], %s391
          %s393 = sand.u32 %s210, 1
          %s394 = smul.addr %s393, 576
          %s395 = scalar_lea.vmem [#allocation10], %s394
          %s396 = smul.u32 16, %s34
          %s398 = ssub.s32 9216, 9216
          %399 = vsyncadd %s392, %s398
          %s400 = smul.addr %s396, 64
          %s401 = scalar_lea.hbm %s7, %s400
          %s402 = sshll.u32 %s395, 4
          %s403 = int_to_ptr.vmem [resolvable:$true] %s402
          %408 = dma.hbm_to_vmem [thread:$0]  %s401, 9216, %s403, %s392, 2048, 1024, 64
        $region48: #{tpu_custom_call.1} parent=43 // pred_fallthru
          _
        // Predicated region
        $region49: #{tpu_custom_call.1} parent=43 // pred_check
          %p409 = pneg %p246
        $region50: #{tpu_custom_call.1} parent=43 // pred_check_branch
          %411 = sbr.rel (%p409) target = $region52
        $region51: #{tpu_custom_call.1} parent=43 // pred_region
          %s412 = sand.u32 %s26, 1
          %s413 = scalar_lea.sflag [#allocation3], %s412
          %s414 = sand.u32 %s236, 1
          %s415 = smul.addr %s414, 128
          %s416 = scalar_lea.vmem [#allocation11], %s415
          %s417 = smul.u32 16, %s34
          %s419 = ssub.s32 2048, 2048
          %420 = vsyncadd %s413, %s419
          %s421 = smul.addr %s417, 64
          %s422 = scalar_lea.hbm %s8, %s421
          %s423 = sshll.u32 %s416, 4
          %s424 = int_to_ptr.vmem [resolvable:$true] %s423
          %429 = dma.hbm_to_vmem [thread:$0]  %s422, 2048, %s424, %s413, 2048, 1024, 64
        $region52: #{tpu_custom_call.1} parent=43 // pred_fallthru
          _
      $region44: #{tpu_custom_call.1} parent=5 // pred_fallthru
        _
      %p430 = scmp.le.s32.totalorder 1, %s26
      %p431 = scmp.lt.s32.totalorder %s26, 3
      %p432 = pnand %p430, %p431
      %p433 = pneg %p432
      // Predicated region
      $region53: #{tpu_custom_call.1} parent=5 // pred_check
        _
      $region54: #{tpu_custom_call.1} parent=5 // pred_check_branch
        %435 = sbr.rel (%p432) target = $region56
      $region55: #{tpu_custom_call.1} parent=5 // pred_region
        %s436 = ssub.s32 %s26, 1
        // Predicated region
        $region57: #{tpu_custom_call.1} parent=55 // pred_check
          %p437 = pneg %p64
        $region58: #{tpu_custom_call.1} parent=55 // pred_check_branch
          %439 = sbr.rel (%p437) target = $region60
        $region59: #{tpu_custom_call.1} parent=55 // pred_region
          %440 = dma.done [#allocation3], 128
        $region60: #{tpu_custom_call.1} parent=55 // pred_fallthru
          _
        // Predicated region
        $region61: #{tpu_custom_call.1} parent=55 // pred_check
          %p441 = pneg %p90
        $region62: #{tpu_custom_call.1} parent=55 // pred_check_branch
          %443 = sbr.rel (%p441) target = $region64
        $region63: #{tpu_custom_call.1} parent=55 // pred_region
          %444 = dma.done [#allocation6], 128
        $region64: #{tpu_custom_call.1} parent=55 // pred_fallthru
          _
        // Predicated region
        $region65: #{tpu_custom_call.1} parent=55 // pred_check
          %p445 = pneg %p116
        $region66: #{tpu_custom_call.1} parent=55 // pred_check_branch
          %447 = sbr.rel (%p445) target = $region68
        $region67: #{tpu_custom_call.1} parent=55 // pred_region
          %448 = dma.done [#allocation6], 64
        $region68: #{tpu_custom_call.1} parent=55 // pred_fallthru
          _
        // Predicated region
        $region69: #{tpu_custom_call.1} parent=55 // pred_check
          %p449 = pneg %p179
        $region70: #{tpu_custom_call.1} parent=55 // pred_check_branch
          %451 = sbr.rel (%p449) target = $region72
        $region71: #{tpu_custom_call.1} parent=55 // pred_region
          %452 = dma.done [#allocation9], 512
        $region72: #{tpu_custom_call.1} parent=55 // pred_fallthru
          _
        %s453 = sand.u32 %s31, 1
        %s454 = scalar_lea.sflag [#allocation3], %s453
        %s455 = sand.u32 %s213, 1
        %s456 = smul.addr %s455, 576
        %s457 = scalar_lea.vmem [#allocation10], %s456
        // Predicated region
        $region73: #{tpu_custom_call.1} parent=55 // pred_check
          %p458 = pneg %p226
        $region74: #{tpu_custom_call.1} parent=55 // pred_check_branch
          %460 = sbr.rel (%p458) target = $region76
        $region75: #{tpu_custom_call.1} parent=55 // pred_region
          %461 = dma.done %s454, 9216
        $region76: #{tpu_custom_call.1} parent=55 // pred_fallthru
          _
        %s462 = sand.u32 %s31, 1
        %s463 = scalar_lea.sflag [#allocation3], %s462
        %s464 = sand.u32 %s239, 1
        %s465 = smul.addr %s464, 128
        %s466 = scalar_lea.vmem [#allocation11], %s465
        // Predicated region
        $region77: #{tpu_custom_call.1} parent=55 // pred_check
          %p467 = pneg %p252
        $region78: #{tpu_custom_call.1} parent=55 // pred_check_branch
          %469 = sbr.rel (%p467) target = $region80
        $region79: #{tpu_custom_call.1} parent=55 // pred_region
          %470 = dma.done %s463, 2048
        $region80: #{tpu_custom_call.1} parent=55 // pred_fallthru
          _
        %p471 = pneg %p64
        %p472 = pneg %p61
        %p473 = pneg %p90
        %p474 = pneg %p87
        %p475 = pneg %p116
        %p476 = pneg %p113
        %p477 = pneg %p137
        %p478 = pneg %p134
        %p479 = pneg %p158
        %p480 = pneg %p155
        %p481 = pneg %p179
        %p482 = pneg %p176
        %p483 = pneg %p200
        %p484 = pneg %p197
        %s485 = sand.u32 %s31, 1
        %s486 = scalar_lea.sflag [#allocation3], %s485
        %s487 = sand.u32 %s213, 1
        %s488 = smul.addr %s487, 576
        %s489 = scalar_lea.vmem [#allocation10], %s488
        %p490 = pneg %p226
        %p491 = pneg %p223
        %s492 = sand.u32 %s31, 1
        %s493 = scalar_lea.sflag [#allocation3], %s492
        %s494 = sand.u32 %s239, 1
        %s495 = smul.addr %s494, 128
        %s496 = scalar_lea.vmem [#allocation11], %s495
        %p497 = pneg %p252
        %p498 = pneg %p249
        %p499 = pneg %p280
        %p500 = pneg %p277
        %s501 = sand.u32 %s267, 1
        %s502 = scalar_lea.sflag [#allocation4], %s501
        %s503 = sand.u32 %s267, 1
        %s504 = smul.addr %s503, 64
        %s505 = scalar_lea.vmem [#allocation12], %s504
        %p506 = pneg %p308
        %p507 = pneg %p305
        %s508 = sand.u32 %s295, 1
        %s509 = scalar_lea.sflag [#allocation14], %s508
        %s510 = sand.u32 %s295, 1
        %s511 = smul.addr %s510, 64
        %s512 = scalar_lea.vmem [#allocation13], %s511
        %s513 = smul.u32 16, %s36
        %s514 = smul.u32 16, %s36
        %s515 = smul.u32 16, %s36
        %s516 = smul.u32 16, %s36
        %v518 = vld [vmem:[#allocation2] sm:$0xff]
        %v519 = vld [vmem:[%s3] sm:$0xff]
        %v520 = vld [vmem:[%s4] sm:$0x1]
        %v522 = vlaneseq
        %v523 = vshrl.u32 %v522, 7
        %v524 = vsub.s32 0, %v523
        %v525 = vrot.slane %v520, %v524
        %vm527 = vcmask 64512
        %v529 = vsel %vm527, %v518, 0
        %531 = vmatprep.subr.mxu0 0.0
        %532 = vmatpush1.msra.mxu0 %v519
        %533 = vmatprep.subr.mxu0 0.0
        %534 = vmatpush1.msra.mxu0 0.0
        %535 = vmatprep.subr.mxu0 0.0
        %536 = vmatpush1.msra.mxu0 0.0
        %537 = vmatprep.subr.mxu0 0.0
        %538 = vmatpush1.msra.mxu0 0.0
        %539 = vmatprep.subr.mxu0 0.0
        %540 = vmatpush1.msra.mxu0 0.0
        %541 = vmatprep.subr.mxu0 0.0
        %542 = vmatpush1.msra.mxu0 0.0
        %543 = vmatprep.subr.mxu0 0.0
        %544 = vmatpush1.msra.mxu0 0.0
        %545 = vmatprep.subr.mxu0 0.0
        %546 = vmatpush1.msra.mxu0 0.0
        %547 = vmatprep.subr.mxu0 0.0
        %548 = vmatpush1.msra.mxu0 0.0
        %549 = vmatprep.subr.mxu0 0.0
        %550 = vmatpush1.msra.mxu0 0.0
        %551 = vmatprep.subr.mxu0 0.0
        %552 = vmatpush1.msra.mxu0 0.0
        %553 = vmatprep.subr.mxu0 0.0
        %554 = vmatpush1.msra.mxu0 0.0
        %555 = vmatprep.subr.mxu0 0.0
        %556 = vmatpush1.msra.mxu0 0.0
        %557 = vmatprep.subr.mxu0 0.0
        %558 = vmatpush1.msra.mxu0 0.0
        %559 = vmatprep.subr.mxu0 0.0
        %560 = vmatpush1.msra.mxu0 0.0
        %561 = vmatprep.subr.mxu0 0.0
        %562 = vmatpush1.msra.mxu0 0.0
        %563 = vmatprep.subr.mxu0 0.0
        %564 = vmatpush1.msra.mxu0 0.0
        %565 = vmatprep.subr.mxu0 0.0
        %566 = vmatpush1.msra.mxu0 0.0
        %567 = vmatprep.subr.mxu0 0.0
        %568 = vmatpush1.msra.mxu0 0.0
        %569 = vmatprep.subr.mxu0 0.0
        %570 = vmatpush1.msra.mxu0 0.0
        %571 = vmatprep.subr.mxu0 0.0
        %572 = vmatpush1.msra.mxu0 0.0
        %573 = vmatprep.subr.mxu0 0.0
        %574 = vmatpush1.msra.mxu0 0.0
        %575 = vmatprep.subr.mxu0 0.0
        %576 = vmatpush1.msra.mxu0 0.0
        %577 = vmatprep.subr.mxu0 0.0
        %578 = vmatpush1.msra.mxu0 0.0
        %579 = vmatprep.subr.mxu0 0.0
        %580 = vmatpush1.msra.mxu0 0.0
        %581 = vmatprep.subr.mxu0 0.0
        %582 = vmatpush1.msra.mxu0 0.0
        %583 = vmatprep.subr.mxu0 0.0
        %584 = vmatpush1.msra.mxu0 0.0
        %585 = vmatprep.subr.mxu0 0.0
        %586 = vmatpush1.msra.mxu0 0.0
        %587 = vmatprep.subr.mxu0 0.0
        %588 = vmatpush1.msra.mxu0 0.0
        %589 = vmatprep.subr.mxu0 0.0
        %590 = vmatpush1.msra.mxu0 0.0
        %591 = vmatprep.subr.mxu0 0.0
        %592 = vmatpush1.msra.mxu0 0.0
        %593 = vmatprep.subr.mxu0 0.0
        %594 = vmatpush1.msra.mxu0 0.0
        %595 = vmatprep.mubr.f32.mxu0 0.0
        %596 = vmatmul.mubr.f32.gmra.mrb[0].mxu0 %v529
        %v597 = vpop.f32.mrb[0].mxu0
        %v598 = vadd.f32 %v525, %v597
        %v599 = vpop.f32.mrb[0].mxu0
        %600 = vdwg.mxu0
        %v601 = vmax.f32 %v598, 0.0
        %v602 = vld [vmem:[#allocation8] sm:$0xff]
        %v603 = vld [vmem:[#allocation8 + $0x8] sm:$0xff]
        %v604 = vld [vmem:[#allocation8 + $0x10] sm:$0xff]
        %v605 = vld [vmem:[#allocation8 + $0x18] sm:$0xff]
        %v606 = vld [vmem:[%s6] sm:$0x1]
        %v608 = vlaneseq
        %v609 = vshrl.u32 %v608, 7
        %v610 = vsub.s32 0, %v609
        %v611 = vrot.slane %v606, %v610
        %vm613 = vcmask 261120
        %v615 = vsel %vm613, %v601, 0
        %617 = vmatprep.subr.mxu0 0.0
        %618 = vmatpush1.msra.mxu0 %v602
        %619 = vmatprep.subr.mxu0 0.0
        %620 = vmatpush1.msra.mxu0 %v603
        %621 = vmatprep.subr.mxu0 0.0
        %622 = vmatpush1.msra.mxu0 %v604
        %623 = vmatprep.subr.mxu0 0.0
        %624 = vmatpush1.msra.mxu0 %v605
        %625 = vmatprep.subr.mxu0 0.0
        %626 = vmatpush1.msra.mxu0 0.0
        %627 = vmatprep.subr.mxu0 0.0
        %628 = vmatpush1.msra.mxu0 0.0
        %629 = vmatprep.subr.mxu0 0.0
        %630 = vmatpush1.msra.mxu0 0.0
        %631 = vmatprep.subr.mxu0 0.0
        %632 = vmatpush1.msra.mxu0 0.0
        %633 = vmatprep.subr.mxu0 0.0
        %634 = vmatpush1.msra.mxu0 0.0
        %635 = vmatprep.subr.mxu0 0.0
        %636 = vmatpush1.msra.mxu0 0.0
        %637 = vmatprep.subr.mxu0 0.0
        %638 = vmatpush1.msra.mxu0 0.0
        %639 = vmatprep.subr.mxu0 0.0
        %640 = vmatpush1.msra.mxu0 0.0
        %641 = vmatprep.subr.mxu0 0.0
        %642 = vmatpush1.msra.mxu0 0.0
        %643 = vmatprep.subr.mxu0 0.0
        %644 = vmatpush1.msra.mxu0 0.0
        %645 = vmatprep.subr.mxu0 0.0
        %646 = vmatpush1.msra.mxu0 0.0
        %647 = vmatprep.subr.mxu0 0.0
        %648 = vmatpush1.msra.mxu0 0.0
        %649 = vmatprep.subr.mxu0 0.0
        %650 = vmatpush1.msra.mxu0 0.0
        %651 = vmatprep.subr.mxu0 0.0
        %652 = vmatpush1.msra.mxu0 0.0
        %653 = vmatprep.subr.mxu0 0.0
        %654 = vmatpush1.msra.mxu0 0.0
        %655 = vmatprep.subr.mxu0 0.0
        %656 = vmatpush1.msra.mxu0 0.0
        %657 = vmatprep.subr.mxu0 0.0
        %658 = vmatpush1.msra.mxu0 0.0
        %659 = vmatprep.subr.mxu0 0.0
        %660 = vmatpush1.msra.mxu0 0.0
        %661 = vmatprep.subr.mxu0 0.0
        %662 = vmatpush1.msra.mxu0 0.0
        %663 = vmatprep.subr.mxu0 0.0
        %664 = vmatpush1.msra.mxu0 0.0
        %665 = vmatprep.subr.mxu0 0.0
        %666 = vmatpush1.msra.mxu0 0.0
        %667 = vmatprep.subr.mxu0 0.0
        %668 = vmatpush1.msra.mxu0 0.0
        %669 = vmatprep.subr.mxu0 0.0
        %670 = vmatpush1.msra.mxu0 0.0
        %671 = vmatprep.subr.mxu0 0.0
        %672 = vmatpush1.msra.mxu0 0.0
        %673 = vmatprep.subr.mxu0 0.0
        %674 = vmatpush1.msra.mxu0 0.0
        %675 = vmatprep.subr.mxu0 0.0
        %676 = vmatpush1.msra.mxu0 0.0
        %677 = vmatprep.subr.mxu0 0.0
        %678 = vmatpush1.msra.mxu0 0.0
        %679 = vmatprep.subr.mxu0 0.0
        %680 = vmatpush1.msra.mxu0 0.0
        %681 = vmatprep.mubr.f32.mxu0 0.0
        %682 = vmatmul.mubr.f32.gmra.mrb[0].mxu0 %v615
        %v683 = vpop.f32.mrb[0].mxu0
        %v684 = vadd.f32 %v611, %v683
        %v685 = vpop.f32.mrb[0].mxu0
        %686 = vdwg.mxu0
        %v687 = vld [vmem:[#allocation5] sm:$0xff]
        %v688 = vmul.f32 %v687, %v684
        %v689 = vpack.c.bf16 %v688, %v688
        %v690 = vld [vmem:[%s457] sm:$0xff]
        %v691 = vld [vmem:[%s457 + $0x8] sm:$0xff]
        %v692 = vld [vmem:[%s457 + $0x10] sm:$0xff]
        %v693 = vld [vmem:[%s457 + $0x18] sm:$0xff]
        %v694 = vld [vmem:[%s457 + $0x20] sm:$0xff]
        %v695 = vld [vmem:[%s457 + $0x28] sm:$0xff]
        %v696 = vld [vmem:[%s457 + $0x30] sm:$0xff]
        %v697 = vld [vmem:[%s457 + $0x38] sm:$0xff]
        %v698 = vld [vmem:[%s457 + $0x40] sm:$0xff]
        %v699 = vld [vmem:[%s457 + $0x48] sm:$0xff]
        %v700 = vld [vmem:[%s457 + $0x50] sm:$0xff]
        %v701 = vld [vmem:[%s457 + $0x58] sm:$0xff]
        %v702 = vld [vmem:[%s457 + $0x60] sm:$0xff]
        %v703 = vld [vmem:[%s457 + $0x68] sm:$0xff]
        %v704 = vld [vmem:[%s457 + $0x70] sm:$0xff]
        %v705 = vld [vmem:[%s457 + $0x78] sm:$0xff]
        %v706 = vld [vmem:[%s457 + $0x80] sm:$0xff]
        %v707 = vld [vmem:[%s457 + $0x88] sm:$0xff]
        %v708 = vld [vmem:[%s457 + $0x90] sm:$0xff]
        %v709 = vld [vmem:[%s457 + $0x98] sm:$0xff]
        %v710 = vld [vmem:[%s457 + $0xa0] sm:$0xff]
        %v711 = vld [vmem:[%s457 + $0xa8] sm:$0xff]
        %v712 = vld [vmem:[%s457 + $0xb0] sm:$0xff]
        %v713 = vld [vmem:[%s457 + $0xb8] sm:$0xff]
        %v714 = vld [vmem:[%s457 + $0xc0] sm:$0xff]
        %v715 = vld [vmem:[%s457 + $0xc8] sm:$0xff]
        %v716 = vld [vmem:[%s457 + $0xd0] sm:$0xff]
        %v717 = vld [vmem:[%s457 + $0xd8] sm:$0xff]
        %v718 = vld [vmem:[%s457 + $0xe0] sm:$0xff]
        %v719 = vld [vmem:[%s457 + $0xe8] sm:$0xff]
        %v720 = vld [vmem:[%s457 + $0xf0] sm:$0xff]
        %v721 = vld [vmem:[%s457 + $0xf8] sm:$0xff]
        %v722 = vld [vmem:[%s457 + $0x100] sm:$0xff]
        %v723 = vld [vmem:[%s457 + $0x108] sm:$0xff]
        %v724 = vld [vmem:[%s457 + $0x110] sm:$0xff]
        %v725 = vld [vmem:[%s457 + $0x118] sm:$0xff]
        %v726 = vld [vmem:[%s457 + $0x120] sm:$0xff]
        %v727 = vld [vmem:[%s457 + $0x128] sm:$0xff]
        %v728 = vld [vmem:[%s457 + $0x130] sm:$0xff]
        %v729 = vld [vmem:[%s457 + $0x138] sm:$0xff]
        %v730 = vld [vmem:[%s457 + $0x140] sm:$0xff]
        %v731 = vld [vmem:[%s457 + $0x148] sm:$0xff]
        %v732 = vld [vmem:[%s457 + $0x150] sm:$0xff]
        %v733 = vld [vmem:[%s457 + $0x158] sm:$0xff]
        %v734 = vld [vmem:[%s457 + $0x160] sm:$0xff]
        %v735 = vld [vmem:[%s457 + $0x168] sm:$0xff]
        %v736 = vld [vmem:[%s457 + $0x170] sm:$0xff]
        %v737 = vld [vmem:[%s457 + $0x178] sm:$0xff]
        %v738 = vld [vmem:[%s457 + $0x180] sm:$0xff]
        %v739 = vld [vmem:[%s457 + $0x188] sm:$0xff]
        %v740 = vld [vmem:[%s457 + $0x190] sm:$0xff]
        %v741 = vld [vmem:[%s457 + $0x198] sm:$0xff]
        %v742 = vld [vmem:[%s457 + $0x1a0] sm:$0xff]
        %v743 = vld [vmem:[%s457 + $0x1a8] sm:$0xff]
        %v744 = vld [vmem:[%s457 + $0x1b0] sm:$0xff]
        %v745 = vld [vmem:[%s457 + $0x1b8] sm:$0xff]
        %v746 = vld [vmem:[%s457 + $0x1c0] sm:$0xff]
        %v747 = vld [vmem:[%s457 + $0x1c8] sm:$0xff]
        %v748 = vld [vmem:[%s457 + $0x1d0] sm:$0xff]
        %v749 = vld [vmem:[%s457 + $0x1d8] sm:$0xff]
        %v750 = vld [vmem:[%s457 + $0x1e0] sm:$0xff]
        %v751 = vld [vmem:[%s457 + $0x1e8] sm:$0xff]
        %v752 = vld [vmem:[%s457 + $0x1f0] sm:$0xff]
        %v753 = vld [vmem:[%s457 + $0x1f8] sm:$0xff]
        %v754 = vld [vmem:[%s457 + $0x200] sm:$0xff]
        %v755 = vld [vmem:[%s457 + $0x208] sm:$0xff]
        %v756 = vld [vmem:[%s457 + $0x210] sm:$0xff]
        %v757 = vld [vmem:[%s457 + $0x218] sm:$0xff]
        %v758 = vld [vmem:[%s457 + $0x220] sm:$0xff]
        %v759 = vld [vmem:[%s457 + $0x228] sm:$0xff]
        %v760 = vld [vmem:[%s457 + $0x230] sm:$0xff]
        %v761 = vld [vmem:[%s457 + $0x238] sm:$0xff]
        %v834 = vunpack.c.l.b16 %v690
        %v835 = vunpack.c.h.b16 %v690
        %v836 = vunpack.c.l.b16 %v691
        %v837 = vunpack.c.h.b16 %v691
        %v838 = vunpack.c.l.b16 %v692
        %v839 = vunpack.c.h.b16 %v692
        %v840 = vunpack.c.l.b16 %v693
        %v841 = vunpack.c.h.b16 %v693
        %v842 = vunpack.c.l.b16 %v694
        %v843 = vunpack.c.h.b16 %v694
        %v844 = vunpack.c.l.b16 %v695
        %v845 = vunpack.c.h.b16 %v695
        %v846 = vunpack.c.l.b16 %v696
        %v847 = vunpack.c.h.b16 %v696
        %v848 = vunpack.c.l.b16 %v697
        %v849 = vunpack.c.h.b16 %v697
        %v850 = vunpack.c.l.b16 %v698
        %v851 = vunpack.c.h.b16 %v698
        %v852 = vunpack.c.l.b16 %v699
        %v853 = vunpack.c.h.b16 %v699
        %v854 = vunpack.c.l.b16 %v700
        %v855 = vunpack.c.h.b16 %v700
        %v856 = vunpack.c.l.b16 %v701
        %v857 = vunpack.c.h.b16 %v701
        %v858 = vunpack.c.l.b16 %v702
        %v859 = vunpack.c.h.b16 %v702
        %v860 = vunpack.c.l.b16 %v703
        %v861 = vunpack.c.h.b16 %v703
        %v862 = vunpack.c.l.b16 %v704
        %v863 = vunpack.c.h.b16 %v704
        %v864 = vunpack.c.l.b16 %v705
        %v865 = vunpack.c.h.b16 %v705
        %v866 = vunpack.c.l.b16 %v706
        %v867 = vunpack.c.h.b16 %v706
        %v868 = vunpack.c.l.b16 %v707
        %v869 = vunpack.c.h.b16 %v707
        %v870 = vunpack.c.l.b16 %v708
        %v871 = vunpack.c.h.b16 %v708
        %v872 = vunpack.c.l.b16 %v709
        %v873 = vunpack.c.h.b16 %v709
        %v874 = vunpack.c.l.b16 %v710
        %v875 = vunpack.c.h.b16 %v710
        %v876 = vunpack.c.l.b16 %v711
        %v877 = vunpack.c.h.b16 %v711
        %v878 = vunpack.c.l.b16 %v712
        %v879 = vunpack.c.h.b16 %v712
        %v880 = vunpack.c.l.b16 %v713
        %v881 = vunpack.c.h.b16 %v713
        %v882 = vunpack.c.l.b16 %v714
        %v883 = vunpack.c.h.b16 %v714
        %v884 = vunpack.c.l.b16 %v715
        %v885 = vunpack.c.h.b16 %v715
        %v886 = vunpack.c.l.b16 %v716
        %v887 = vunpack.c.h.b16 %v716
        %v888 = vunpack.c.l.b16 %v717
        %v889 = vunpack.c.h.b16 %v717
        %v890 = vunpack.c.l.b16 %v718
        %v891 = vunpack.c.h.b16 %v718
        %v892 = vunpack.c.l.b16 %v719
        %v893 = vunpack.c.h.b16 %v719
        %v894 = vunpack.c.l.b16 %v720
        %v895 = vunpack.c.h.b16 %v720
        %v896 = vunpack.c.l.b16 %v721
        %v897 = vunpack.c.h.b16 %v721
        %v898 = vunpack.c.l.b16 %v722
        %v899 = vunpack.c.h.b16 %v722
        %v900 = vunpack.c.l.b16 %v723
        %v901 = vunpack.c.h.b16 %v723
        %v902 = vunpack.c.l.b16 %v724
        %v903 = vunpack.c.h.b16 %v724
        %v904 = vunpack.c.l.b16 %v725
        %v905 = vunpack.c.h.b16 %v725
        %v906 = vunpack.c.l.b16 %v726
        %v907 = vunpack.c.h.b16 %v726
        %v908 = vunpack.c.l.b16 %v727
        %v909 = vunpack.c.h.b16 %v727
        %v910 = vunpack.c.l.b16 %v728
        %v911 = vunpack.c.h.b16 %v728
        %v912 = vunpack.c.l.b16 %v729
        %v913 = vunpack.c.h.b16 %v729
        %v914 = vunpack.c.l.b16 %v730
        %v915 = vunpack.c.h.b16 %v730
        %v916 = vunpack.c.l.b16 %v731
        %v917 = vunpack.c.h.b16 %v731
        %v918 = vunpack.c.l.b16 %v732
        %v919 = vunpack.c.h.b16 %v732
        %v920 = vunpack.c.l.b16 %v733
        %v921 = vunpack.c.h.b16 %v733
        %v922 = vunpack.c.l.b16 %v734
        %v923 = vunpack.c.h.b16 %v734
        %v924 = vunpack.c.l.b16 %v735
        %v925 = vunpack.c.h.b16 %v735
        %v926 = vunpack.c.l.b16 %v736
        %v927 = vunpack.c.h.b16 %v736
        %v928 = vunpack.c.l.b16 %v737
        %v929 = vunpack.c.h.b16 %v737
        %v930 = vunpack.c.l.b16 %v738
        %v931 = vunpack.c.h.b16 %v738
        %v932 = vunpack.c.l.b16 %v739
        %v933 = vunpack.c.h.b16 %v739
        %v934 = vunpack.c.l.b16 %v740
        %v935 = vunpack.c.h.b16 %v740
        %v936 = vunpack.c.l.b16 %v741
        %v937 = vunpack.c.h.b16 %v741
        %v938 = vunpack.c.l.b16 %v742
        %v939 = vunpack.c.h.b16 %v742
        %v940 = vunpack.c.l.b16 %v743
        %v941 = vunpack.c.h.b16 %v743
        %v942 = vunpack.c.l.b16 %v744
        %v943 = vunpack.c.h.b16 %v744
        %v944 = vunpack.c.l.b16 %v745
        %v945 = vunpack.c.h.b16 %v745
        %v946 = vunpack.c.l.b16 %v746
        %v947 = vunpack.c.h.b16 %v746
        %v948 = vunpack.c.l.b16 %v747
        %v949 = vunpack.c.h.b16 %v747
        %v950 = vunpack.c.l.b16 %v748
        %v951 = vunpack.c.h.b16 %v748
        %v952 = vunpack.c.l.b16 %v749
        %v953 = vunpack.c.h.b16 %v749
        %v954 = vunpack.c.l.b16 %v750
        %v955 = vunpack.c.h.b16 %v750
        %v956 = vunpack.c.l.b16 %v751
        %v957 = vunpack.c.h.b16 %v751
        %v958 = vunpack.c.l.b16 %v752
        %v959 = vunpack.c.h.b16 %v752
        %v960 = vunpack.c.l.b16 %v753
        %v961 = vunpack.c.h.b16 %v753
        %v962 = vunpack.c.l.b16 %v754
        %v963 = vunpack.c.h.b16 %v754
        %v964 = vunpack.c.l.b16 %v755
        %v965 = vunpack.c.h.b16 %v755
        %v966 = vunpack.c.l.b16 %v756
        %v967 = vunpack.c.h.b16 %v756
        %v968 = vunpack.c.l.b16 %v757
        %v969 = vunpack.c.h.b16 %v757
        %v970 = vunpack.c.l.b16 %v758
        %v971 = vunpack.c.h.b16 %v758
        %v972 = vunpack.c.l.b16 %v759
        %v973 = vunpack.c.h.b16 %v759
        %v974 = vunpack.c.l.b16 %v760
        %v975 = vunpack.c.h.b16 %v760
        %v976 = vunpack.c.l.b16 %v761
        %v977 = vunpack.c.h.b16 %v761
        %v978 = vpack.c.b16 %v850, %v834
        %v979 = vpack.c.b16 %v851, %v835
        %v980 = vpack.c.b16 %v852, %v836
        %v981 = vpack.c.b16 %v853, %v837
        %v982 = vpack.c.b16 %v854, %v838
        %v983 = vpack.c.b16 %v855, %v839
        %v984 = vpack.c.b16 %v856, %v840
        %v985 = vpack.c.b16 %v857, %v841
        %v986 = vpack.c.b16 %v858, %v842
        %v987 = vpack.c.b16 %v859, %v843
        %v988 = vpack.c.b16 %v860, %v844
        %v989 = vpack.c.b16 %v861, %v845
        %v990 = vpack.c.b16 %v862, %v846
        %v991 = vpack.c.b16 %v863, %v847
        %v992 = vpack.c.b16 %v864, %v848
        %v993 = vpack.c.b16 %v865, %v849
        %v994 = vpack.c.b16 %v882, %v866
        %v995 = vpack.c.b16 %v883, %v867
        %v996 = vpack.c.b16 %v884, %v868
        %v997 = vpack.c.b16 %v885, %v869
        %v998 = vpack.c.b16 %v886, %v870
        %v999 = vpack.c.b16 %v887, %v871
        %v1000 = vpack.c.b16 %v888, %v872
        %v1001 = vpack.c.b16 %v889, %v873
        %v1002 = vpack.c.b16 %v890, %v874
        %v1003 = vpack.c.b16 %v891, %v875
        %v1004 = vpack.c.b16 %v892, %v876
        %v1005 = vpack.c.b16 %v893, %v877
        %v1006 = vpack.c.b16 %v894, %v878
        %v1007 = vpack.c.b16 %v895, %v879
        %v1008 = vpack.c.b16 %v896, %v880
        %v1009 = vpack.c.b16 %v897, %v881
        %v1010 = vpack.c.b16 %v914, %v898
        %v1011 = vpack.c.b16 %v915, %v899
        %v1012 = vpack.c.b16 %v916, %v900
        %v1013 = vpack.c.b16 %v917, %v901
        %v1014 = vpack.c.b16 %v918, %v902
        %v1015 = vpack.c.b16 %v919, %v903
        %v1016 = vpack.c.b16 %v920, %v904
        %v1017 = vpack.c.b16 %v921, %v905
        %v1018 = vpack.c.b16 %v922, %v906
        %v1019 = vpack.c.b16 %v923, %v907
        %v1020 = vpack.c.b16 %v924, %v908
        %v1021 = vpack.c.b16 %v925, %v909
        %v1022 = vpack.c.b16 %v926, %v910
        %v1023 = vpack.c.b16 %v927, %v911
        %v1024 = vpack.c.b16 %v928, %v912
        %v1025 = vpack.c.b16 %v929, %v913
        %v1026 = vpack.c.b16 %v946, %v930
        %v1027 = vpack.c.b16 %v947, %v931
        %v1028 = vpack.c.b16 %v948, %v932
        %v1029 = vpack.c.b16 %v949, %v933
        %v1030 = vpack.c.b16 %v950, %v934
        %v1031 = vpack.c.b16 %v951, %v935
        %v1032 = vpack.c.b16 %v952, %v936
        %v1033 = vpack.c.b16 %v953, %v937
        %v1034 = vpack.c.b16 %v954, %v938
        %v1035 = vpack.c.b16 %v955, %v939
        %v1036 = vpack.c.b16 %v956, %v940
        %v1037 = vpack.c.b16 %v957, %v941
        %v1038 = vpack.c.b16 %v958, %v942
        %v1039 = vpack.c.b16 %v959, %v943
        %v1040 = vpack.c.b16 %v960, %v944
        %v1041 = vpack.c.b16 %v961, %v945
        %v1042 = vpack.c.b16 %v962, %v962
        %v1043 = vpack.c.b16 %v963, %v963
        %v1044 = vpack.c.b16 %v964, %v964
        %v1045 = vpack.c.b16 %v965, %v965
        %v1046 = vpack.c.b16 %v966, %v966
        %v1047 = vpack.c.b16 %v967, %v967
        %v1048 = vpack.c.b16 %v968, %v968
        %v1049 = vpack.c.b16 %v969, %v969
        %v1050 = vpack.c.b16 %v970, %v970
        %v1051 = vpack.c.b16 %v971, %v971
        %v1052 = vpack.c.b16 %v972, %v972
        %v1053 = vpack.c.b16 %v973, %v973
        %v1054 = vpack.c.b16 %v974, %v974
        %v1055 = vpack.c.b16 %v975, %v975
        %v1056 = vpack.c.b16 %v976, %v976
        %v1057 = vpack.c.b16 %v977, %v977
        %vm1122 = vcmask 588800
        %v1124 = vsel %vm1122, %v689, 0
        %vm1126 = vcmask 1043456
        %v1128 = vsel %vm1126, %v1042, 0
        %v1131 = vsel %vm1126, %v1043, 0
        %v1134 = vsel %vm1126, %v1044, 0
        %v1137 = vsel %vm1126, %v1045, 0
        %v1140 = vsel %vm1126, %v1046, 0
        %v1143 = vsel %vm1126, %v1047, 0
        %v1146 = vsel %vm1126, %v1048, 0
        %v1149 = vsel %vm1126, %v1049, 0
        %v1152 = vsel %vm1126, %v1050, 0
        %v1155 = vsel %vm1126, %v1051, 0
        %v1158 = vsel %vm1126, %v1052, 0
        %v1161 = vsel %vm1126, %v1053, 0
        %v1164 = vsel %vm1126, %v1054, 0
        %v1167 = vsel %vm1126, %v1055, 0
        %v1170 = vsel %vm1126, %v1056, 0
        %v1173 = vsel %vm1126, %v1057, 0
        %1175 = vmatprep.subr.bf16.mxu0 %v979
        %1176 = vmatpush1.bf16.msra.mxu0 %v978
        %1177 = vmatprep.subr.bf16.mxu0 %v995
        %1178 = vmatpush1.bf16.msra.mxu0 %v994
        %1179 = vmatprep.subr.bf16.mxu0 %v1011
        %1180 = vmatpush1.bf16.msra.mxu0 %v1010
        %1181 = vmatprep.subr.bf16.mxu0 %v1027
        %1182 = vmatpush1.bf16.msra.mxu0 %v1026
        %1183 = vmatprep.subr.bf16.mxu0 %v1131
        %1184 = vmatpush1.bf16.msra.mxu0 %v1128
        %1185 = vmatprep.subr.bf16.mxu0 0
        %1186 = vmatpush1.bf16.msra.mxu0 0
        %1187 = vmatprep.subr.bf16.mxu0 0
        %1188 = vmatpush1.bf16.msra.mxu0 0
        %1189 = vmatprep.subr.bf16.mxu0 0
        %1190 = vmatpush1.bf16.msra.mxu0 0
        %1191 = vmatprep.subr.bf16.mxu0 0
        %1192 = vmatpush1.bf16.msra.mxu0 0
        %1193 = vmatprep.subr.bf16.mxu0 0
        %1194 = vmatpush1.bf16.msra.mxu0 0
        %1195 = vmatprep.subr.bf16.mxu0 0
        %1196 = vmatpush1.bf16.msra.mxu0 0
        %1197 = vmatprep.subr.bf16.mxu0 0
        %1198 = vmatpush1.bf16.msra.mxu0 0
        %1199 = vmatprep.subr.bf16.mxu0 0
        %1200 = vmatpush1.bf16.msra.mxu0 0
        %1201 = vmatprep.subr.bf16.mxu0 0
        %1202 = vmatpush1.bf16.msra.mxu0 0
        %1203 = vmatprep.subr.bf16.mxu0 0
        %1204 = vmatpush1.bf16.msra.mxu0 0
        %1205 = vmatprep.subr.bf16.mxu0 0
        %1206 = vmatpush1.bf16.msra.mxu0 0
        %1207 = vmatprep.mubr.bf16.mxu0 0
        %1208 = vmatmul.mubr.bf16.gmra.mrb[0].mxu0 %v1124
        %v1209 = vpop.f32.mrb[0].mxu0
        %v1210 = vadd.f32 0.0, %v1209
        %v1211 = vpop.f32.mrb[0].mxu0
        %v1212 = vadd.f32 0.0, %v1211
        %v1213 = vpop.f32.mrb[0].mxu0
        %v1214 = vpop.f32.mrb[0].mxu0
        %1215 = vdwg.mxu0
        %1216 = vmatprep.subr.bf16.mxu0 %v981
        %1217 = vmatpush1.bf16.msra.mxu0 %v980
        %1218 = vmatprep.subr.bf16.mxu0 %v997
        %1219 = vmatpush1.bf16.msra.mxu0 %v996
        %1220 = vmatprep.subr.bf16.mxu0 %v1013
        %1221 = vmatpush1.bf16.msra.mxu0 %v1012
        %1222 = vmatprep.subr.bf16.mxu0 %v1029
        %1223 = vmatpush1.bf16.msra.mxu0 %v1028
        %1224 = vmatprep.subr.bf16.mxu0 %v1137
        %1225 = vmatpush1.bf16.msra.mxu0 %v1134
        %1226 = vmatprep.subr.bf16.mxu0 0
        %1227 = vmatpush1.bf16.msra.mxu0 0
        %1228 = vmatprep.subr.bf16.mxu0 0
        %1229 = vmatpush1.bf16.msra.mxu0 0
        %1230 = vmatprep.subr.bf16.mxu0 0
        %1231 = vmatpush1.bf16.msra.mxu0 0
        %1232 = vmatprep.subr.bf16.mxu0 0
        %1233 = vmatpush1.bf16.msra.mxu0 0
        %1234 = vmatprep.subr.bf16.mxu0 0
        %1235 = vmatpush1.bf16.msra.mxu0 0
        %1236 = vmatprep.subr.bf16.mxu0 0
        %1237 = vmatpush1.bf16.msra.mxu0 0
        %1238 = vmatprep.subr.bf16.mxu0 0
        %1239 = vmatpush1.bf16.msra.mxu0 0
        %1240 = vmatprep.subr.bf16.mxu0 0
        %1241 = vmatpush1.bf16.msra.mxu0 0
        %1242 = vmatprep.subr.bf16.mxu0 0
        %1243 = vmatpush1.bf16.msra.mxu0 0
        %1244 = vmatprep.subr.bf16.mxu0 0
        %1245 = vmatpush1.bf16.msra.mxu0 0
        %1246 = vmatprep.subr.bf16.mxu0 0
        %1247 = vmatpush1.bf16.msra.mxu0 0
        %1248 = vmatprep.mubr.bf16.mxu0 0
        %1249 = vmatmul.mubr.bf16.gmra.mrb[0].mxu0 %v1124
        %v1250 = vpop.f32.mrb[0].mxu0
        %v1251 = vadd.f32 0.0, %v1250
        %v1252 = vpop.f32.mrb[0].mxu0
        %v1253 = vadd.f32 0.0, %v1252
        %v1254 = vpop.f32.mrb[0].mxu0
        %v1255 = vpop.f32.mrb[0].mxu0
        %1256 = vdwg.mxu0
        %1257 = vmatprep.subr.bf16.mxu0 %v983
        %1258 = vmatpush1.bf16.msra.mxu0 %v982
        %1259 = vmatprep.subr.bf16.mxu0 %v999
        %1260 = vmatpush1.bf16.msra.mxu0 %v998
        %1261 = vmatprep.subr.bf16.mxu0 %v1015
        %1262 = vmatpush1.bf16.msra.mxu0 %v1014
        %1263 = vmatprep.subr.bf16.mxu0 %v1031
        %1264 = vmatpush1.bf16.msra.mxu0 %v1030
        %1265 = vmatprep.subr.bf16.mxu0 %v1143
        %1266 = vmatpush1.bf16.msra.mxu0 %v1140
        %1267 = vmatprep.subr.bf16.mxu0 0
        %1268 = vmatpush1.bf16.msra.mxu0 0
        %1269 = vmatprep.subr.bf16.mxu0 0
        %1270 = vmatpush1.bf16.msra.mxu0 0
        %1271 = vmatprep.subr.bf16.mxu0 0
        %1272 = vmatpush1.bf16.msra.mxu0 0
        %1273 = vmatprep.subr.bf16.mxu0 0
        %1274 = vmatpush1.bf16.msra.mxu0 0
        %1275 = vmatprep.subr.bf16.mxu0 0
        %1276 = vmatpush1.bf16.msra.mxu0 0
        %1277 = vmatprep.subr.bf16.mxu0 0
        %1278 = vmatpush1.bf16.msra.mxu0 0
        %1279 = vmatprep.subr.bf16.mxu0 0
        %1280 = vmatpush1.bf16.msra.mxu0 0
        %1281 = vmatprep.subr.bf16.mxu0 0
        %1282 = vmatpush1.bf16.msra.mxu0 0
        %1283 = vmatprep.subr.bf16.mxu0 0
        %1284 = vmatpush1.bf16.msra.mxu0 0
        %1285 = vmatprep.subr.bf16.mxu0 0
        %1286 = vmatpush1.bf16.msra.mxu0 0
        %1287 = vmatprep.subr.bf16.mxu0 0
        %1288 = vmatpush1.bf16.msra.mxu0 0
        %1289 = vmatprep.mubr.bf16.mxu0 0
        %1290 = vmatmul.mubr.bf16.gmra.mrb[0].mxu0 %v1124
        %v1291 = vpop.f32.mrb[0].mxu0
        %v1292 = vadd.f32 0.0, %v1291
        %v1293 = vpop.f32.mrb[0].mxu0
        %v1294 = vadd.f32 0.0, %v1293
        %v1295 = vpop.f32.mrb[0].mxu0
        %v1296 = vpop.f32.mrb[0].mxu0
        %1297 = vdwg.mxu0
        %1298 = vmatprep.subr.bf16.mxu0 %v985
        %1299 = vmatpush1.bf16.msra.mxu0 %v984
        %1300 = vmatprep.subr.bf16.mxu0 %v1001
        %1301 = vmatpush1.bf16.msra.mxu0 %v1000
        %1302 = vmatprep.subr.bf16.mxu0 %v1017
        %1303 = vmatpush1.bf16.msra.mxu0 %v1016
        %1304 = vmatprep.subr.bf16.mxu0 %v1033
        %1305 = vmatpush1.bf16.msra.mxu0 %v1032
        %1306 = vmatprep.subr.bf16.mxu0 %v1149
        %1307 = vmatpush1.bf16.msra.mxu0 %v1146
        %1308 = vmatprep.subr.bf16.mxu0 0
        %1309 = vmatpush1.bf16.msra.mxu0 0
        %1310 = vmatprep.subr.bf16.mxu0 0
        %1311 = vmatpush1.bf16.msra.mxu0 0
        %1312 = vmatprep.subr.bf16.mxu0 0
        %1313 = vmatpush1.bf16.msra.mxu0 0
        %1314 = vmatprep.subr.bf16.mxu0 0
        %1315 = vmatpush1.bf16.msra.mxu0 0
        %1316 = vmatprep.subr.bf16.mxu0 0
        %1317 = vmatpush1.bf16.msra.mxu0 0
        %1318 = vmatprep.subr.bf16.mxu0 0
        %1319 = vmatpush1.bf16.msra.mxu0 0
        %1320 = vmatprep.subr.bf16.mxu0 0
        %1321 = vmatpush1.bf16.msra.mxu0 0
        %1322 = vmatprep.subr.bf16.mxu0 0
        %1323 = vmatpush1.bf16.msra.mxu0 0
        %1324 = vmatprep.subr.bf16.mxu0 0
        %1325 = vmatpush1.bf16.msra.mxu0 0
        %1326 = vmatprep.subr.bf16.mxu0 0
        %1327 = vmatpush1.bf16.msra.mxu0 0
        %1328 = vmatprep.subr.bf16.mxu0 0
        %1329 = vmatpush1.bf16.msra.mxu0 0
        %1330 = vmatprep.mubr.bf16.mxu0 0
        %1331 = vmatmul.mubr.bf16.gmra.mrb[0].mxu0 %v1124
        %v1332 = vpop.f32.mrb[0].mxu0
        %v1333 = vadd.f32 0.0, %v1332
        %v1334 = vpop.f32.mrb[0].mxu0
        %v1335 = vadd.f32 0.0, %v1334
        %v1336 = vpop.f32.mrb[0].mxu0
        %v1337 = vpop.f32.mrb[0].mxu0
        %1338 = vdwg.mxu0
        %1339 = vmatprep.subr.bf16.mxu0 %v987
        %1340 = vmatpush1.bf16.msra.mxu0 %v986
        %1341 = vmatprep.subr.bf16.mxu0 %v1003
        %1342 = vmatpush1.bf16.msra.mxu0 %v1002
        %1343 = vmatprep.subr.bf16.mxu0 %v1019
        %1344 = vmatpush1.bf16.msra.mxu0 %v1018
        %1345 = vmatprep.subr.bf16.mxu0 %v1035
        %1346 = vmatpush1.bf16.msra.mxu0 %v1034
        %1347 = vmatprep.subr.bf16.mxu0 %v1155
        %1348 = vmatpush1.bf16.msra.mxu0 %v1152
        %1349 = vmatprep.subr.bf16.mxu0 0
        %1350 = vmatpush1.bf16.msra.mxu0 0
        %1351 = vmatprep.subr.bf16.mxu0 0
        %1352 = vmatpush1.bf16.msra.mxu0 0
        %1353 = vmatprep.subr.bf16.mxu0 0
        %1354 = vmatpush1.bf16.msra.mxu0 0
        %1355 = vmatprep.subr.bf16.mxu0 0
        %1356 = vmatpush1.bf16.msra.mxu0 0
        %1357 = vmatprep.subr.bf16.mxu0 0
        %1358 = vmatpush1.bf16.msra.mxu0 0
        %1359 = vmatprep.subr.bf16.mxu0 0
        %1360 = vmatpush1.bf16.msra.mxu0 0
        %1361 = vmatprep.subr.bf16.mxu0 0
        %1362 = vmatpush1.bf16.msra.mxu0 0
        %1363 = vmatprep.subr.bf16.mxu0 0
        %1364 = vmatpush1.bf16.msra.mxu0 0
        %1365 = vmatprep.subr.bf16.mxu0 0
        %1366 = vmatpush1.bf16.msra.mxu0 0
        %1367 = vmatprep.subr.bf16.mxu0 0
        %1368 = vmatpush1.bf16.msra.mxu0 0
        %1369 = vmatprep.subr.bf16.mxu0 0
        %1370 = vmatpush1.bf16.msra.mxu0 0
        %1371 = vmatprep.mubr.bf16.mxu0 0
        %1372 = vmatmul.mubr.bf16.gmra.mrb[0].mxu0 %v1124
        %v1373 = vpop.f32.mrb[0].mxu0
        %v1374 = vadd.f32 0.0, %v1373
        %v1375 = vpop.f32.mrb[0].mxu0
        %v1376 = vadd.f32 0.0, %v1375
        %v1377 = vpop.f32.mrb[0].mxu0
        %v1378 = vpop.f32.mrb[0].mxu0
        %1379 = vdwg.mxu0
        %1380 = vmatprep.subr.bf16.mxu0 %v989
        %1381 = vmatpush1.bf16.msra.mxu0 %v988
        %1382 = vmatprep.subr.bf16.mxu0 %v1005
        %1383 = vmatpush1.bf16.msra.mxu0 %v1004
        %1384 = vmatprep.subr.bf16.mxu0 %v1021
        %1385 = vmatpush1.bf16.msra.mxu0 %v1020
        %1386 = vmatprep.subr.bf16.mxu0 %v1037
        %1387 = vmatpush1.bf16.msra.mxu0 %v1036
        %1388 = vmatprep.subr.bf16.mxu0 %v1161
        %1389 = vmatpush1.bf16.msra.mxu0 %v1158
        %1390 = vmatprep.subr.bf16.mxu0 0
        %1391 = vmatpush1.bf16.msra.mxu0 0
        %1392 = vmatprep.subr.bf16.mxu0 0
        %1393 = vmatpush1.bf16.msra.mxu0 0
        %1394 = vmatprep.subr.bf16.mxu0 0
        %1395 = vmatpush1.bf16.msra.mxu0 0
        %1396 = vmatprep.subr.bf16.mxu0 0
        %1397 = vmatpush1.bf16.msra.mxu0 0
        %1398 = vmatprep.subr.bf16.mxu0 0
        %1399 = vmatpush1.bf16.msra.mxu0 0
        %1400 = vmatprep.subr.bf16.mxu0 0
        %1401 = vmatpush1.bf16.msra.mxu0 0
        %1402 = vmatprep.subr.bf16.mxu0 0
        %1403 = vmatpush1.bf16.msra.mxu0 0
        %1404 = vmatprep.subr.bf16.mxu0 0
        %1405 = vmatpush1.bf16.msra.mxu0 0
        %1406 = vmatprep.subr.bf16.mxu0 0
        %1407 = vmatpush1.bf16.msra.mxu0 0
        %1408 = vmatprep.subr.bf16.mxu0 0
        %1409 = vmatpush1.bf16.msra.mxu0 0
        %1410 = vmatprep.subr.bf16.mxu0 0
        %1411 = vmatpush1.bf16.msra.mxu0 0
        %1412 = vmatprep.mubr.bf16.mxu0 0
        %1413 = vmatmul.mubr.bf16.gmra.mrb[0].mxu0 %v1124
        %v1414 = vpop.f32.mrb[0].mxu0
        %v1415 = vadd.f32 0.0, %v1414
        %v1416 = vpop.f32.mrb[0].mxu0
        %v1417 = vadd.f32 0.0, %v1416
        %v1418 = vpop.f32.mrb[0].mxu0
        %v1419 = vpop.f32.mrb[0].mxu0
        %1420 = vdwg.mxu0
        %1421 = vmatprep.subr.bf16.mxu0 %v991
        %1422 = vmatpush1.bf16.msra.mxu0 %v990
        %1423 = vmatprep.subr.bf16.mxu0 %v1007
        %1424 = vmatpush1.bf16.msra.mxu0 %v1006
        %1425 = vmatprep.subr.bf16.mxu0 %v1023
        %1426 = vmatpush1.bf16.msra.mxu0 %v1022
        %1427 = vmatprep.subr.bf16.mxu0 %v1039
        %1428 = vmatpush1.bf16.msra.mxu0 %v1038
        %1429 = vmatprep.subr.bf16.mxu0 %v1167
        %1430 = vmatpush1.bf16.msra.mxu0 %v1164
        %1431 = vmatprep.subr.bf16.mxu0 0
        %1432 = vmatpush1.bf16.msra.mxu0 0
        %1433 = vmatprep.subr.bf16.mxu0 0
        %1434 = vmatpush1.bf16.msra.mxu0 0
        %1435 = vmatprep.subr.bf16.mxu0 0
        %1436 = vmatpush1.bf16.msra.mxu0 0
        %1437 = vmatprep.subr.bf16.mxu0 0
        %1438 = vmatpush1.bf16.msra.mxu0 0
        %1439 = vmatprep.subr.bf16.mxu0 0
        %1440 = vmatpush1.bf16.msra.mxu0 0
        %1441 = vmatprep.subr.bf16.mxu0 0
        %1442 = vmatpush1.bf16.msra.mxu0 0
        %1443 = vmatprep.subr.bf16.mxu0 0
        %1444 = vmatpush1.bf16.msra.mxu0 0
        %1445 = vmatprep.subr.bf16.mxu0 0
        %1446 = vmatpush1.bf16.msra.mxu0 0
        %1447 = vmatprep.subr.bf16.mxu0 0
        %1448 = vmatpush1.bf16.msra.mxu0 0
        %1449 = vmatprep.subr.bf16.mxu0 0
        %1450 = vmatpush1.bf16.msra.mxu0 0
        %1451 = vmatprep.subr.bf16.mxu0 0
        %1452 = vmatpush1.bf16.msra.mxu0 0
        %1453 = vmatprep.mubr.bf16.mxu0 0
        %1454 = vmatmul.mubr.bf16.gmra.mrb[0].mxu0 %v1124
        %v1455 = vpop.f32.mrb[0].mxu0
        %v1456 = vadd.f32 0.0, %v1455
        %v1457 = vpop.f32.mrb[0].mxu0
        %v1458 = vadd.f32 0.0, %v1457
        %v1459 = vpop.f32.mrb[0].mxu0
        %v1460 = vpop.f32.mrb[0].mxu0
        %1461 = vdwg.mxu0
        %1462 = vmatprep.subr.bf16.mxu0 %v993
        %1463 = vmatpush1.bf16.msra.mxu0 %v992
        %1464 = vmatprep.subr.bf16.mxu0 %v1009
        %1465 = vmatpush1.bf16.msra.mxu0 %v1008
        %1466 = vmatprep.subr.bf16.mxu0 %v1025
        %1467 = vmatpush1.bf16.msra.mxu0 %v1024
        %1468 = vmatprep.subr.bf16.mxu0 %v1041
        %1469 = vmatpush1.bf16.msra.mxu0 %v1040
        %1470 = vmatprep.subr.bf16.mxu0 %v1173
        %1471 = vmatpush1.bf16.msra.mxu0 %v1170
        %1472 = vmatprep.subr.bf16.mxu0 0
        %1473 = vmatpush1.bf16.msra.mxu0 0
        %1474 = vmatprep.subr.bf16.mxu0 0
        %1475 = vmatpush1.bf16.msra.mxu0 0
        %1476 = vmatprep.subr.bf16.mxu0 0
        %1477 = vmatpush1.bf16.msra.mxu0 0
        %1478 = vmatprep.subr.bf16.mxu0 0
        %1479 = vmatpush1.bf16.msra.mxu0 0
        %1480 = vmatprep.subr.bf16.mxu0 0
        %1481 = vmatpush1.bf16.msra.mxu0 0
        %1482 = vmatprep.subr.bf16.mxu0 0
        %1483 = vmatpush1.bf16.msra.mxu0 0
        %1484 = vmatprep.subr.bf16.mxu0 0
        %1485 = vmatpush1.bf16.msra.mxu0 0
        %1486 = vmatprep.subr.bf16.mxu0 0
        %1487 = vmatpush1.bf16.msra.mxu0 0
        %1488 = vmatprep.subr.bf16.mxu0 0
        %1489 = vmatpush1.bf16.msra.mxu0 0
        %1490 = vmatprep.subr.bf16.mxu0 0
        %1491 = vmatpush1.bf16.msra.mxu0 0
        %1492 = vmatprep.subr.bf16.mxu0 0
        %1493 = vmatpush1.bf16.msra.mxu0 0
        %1494 = vmatprep.mubr.bf16.mxu0 0
        %1495 = vmatmul.mubr.bf16.gmra.mrb[0].mxu0 %v1124
        %v1496 = vpop.f32.mrb[0].mxu0
        %v1497 = vadd.f32 0.0, %v1496
        %v1498 = vpop.f32.mrb[0].mxu0
        %v1499 = vadd.f32 0.0, %v1498
        %v1500 = vpop.f32.mrb[0].mxu0
        %v1501 = vpop.f32.mrb[0].mxu0
        %1502 = vdwg.mxu0
        %v1503 = vpack.c.bf16 %v1210, %v1210
        %v1504 = vpack.c.bf16 %v1212, %v1212
        %v1505 = vpack.c.bf16 %v1251, %v1251
        %v1506 = vpack.c.bf16 %v1253, %v1253
        %v1507 = vpack.c.bf16 %v1292, %v1292
        %v1508 = vpack.c.bf16 %v1294, %v1294
        %v1509 = vpack.c.bf16 %v1333, %v1333
        %v1510 = vpack.c.bf16 %v1335, %v1335
        %v1511 = vpack.c.bf16 %v1374, %v1374
        %v1512 = vpack.c.bf16 %v1376, %v1376
        %v1513 = vpack.c.bf16 %v1415, %v1415
        %v1514 = vpack.c.bf16 %v1417, %v1417
        %v1515 = vpack.c.bf16 %v1456, %v1456
        %v1516 = vpack.c.bf16 %v1458, %v1458
        %v1517 = vpack.c.bf16 %v1497, %v1497
        %v1518 = vpack.c.bf16 %v1499, %v1499
        %v1535 = vunpack.c.l.b16 %v1503
        %v1536 = vunpack.c.l.b16 %v1504
        %v1537 = vunpack.c.l.b16 %v1505
        %v1538 = vunpack.c.l.b16 %v1506
        %v1539 = vunpack.c.l.b16 %v1507
        %v1540 = vunpack.c.l.b16 %v1508
        %v1541 = vunpack.c.l.b16 %v1509
        %v1542 = vunpack.c.l.b16 %v1510
        %v1543 = vunpack.c.l.b16 %v1511
        %v1544 = vunpack.c.l.b16 %v1512
        %v1545 = vunpack.c.l.b16 %v1513
        %v1546 = vunpack.c.l.b16 %v1514
        %v1547 = vunpack.c.l.b16 %v1515
        %v1548 = vunpack.c.l.b16 %v1516
        %v1549 = vunpack.c.l.b16 %v1517
        %v1550 = vunpack.c.l.b16 %v1518
        %v1551 = vpack.c.b16 %v1536, %v1535
        %v1552 = vpack.c.b16 %v1538, %v1537
        %v1553 = vpack.c.b16 %v1540, %v1539
        %v1554 = vpack.c.b16 %v1542, %v1541
        %v1555 = vpack.c.b16 %v1544, %v1543
        %v1556 = vpack.c.b16 %v1546, %v1545
        %v1557 = vpack.c.b16 %v1548, %v1547
        %v1558 = vpack.c.b16 %v1550, %v1549
        %1567 = vst [vmem:[%s505] sm:$0xff] %v1551
        %1568 = vst [vmem:[%s505 + $0x8] sm:$0xff] %v1552
        %1569 = vst [vmem:[%s505 + $0x10] sm:$0xff] %v1553
        %1570 = vst [vmem:[%s505 + $0x18] sm:$0xff] %v1554
        %1571 = vst [vmem:[%s505 + $0x20] sm:$0xff] %v1555
        %1572 = vst [vmem:[%s505 + $0x28] sm:$0xff] %v1556
        %1573 = vst [vmem:[%s505 + $0x30] sm:$0xff] %v1557
        %1574 = vst [vmem:[%s505 + $0x38] sm:$0xff] %v1558
        %v1575 = vld [vmem:[#allocation7] sm:$0xf]
        %v1576 = vld [vmem:[%s466] sm:$0xff]
        %v1577 = vld [vmem:[%s466 + $0x8] sm:$0xff]
        %v1578 = vld [vmem:[%s466 + $0x10] sm:$0xff]
        %v1579 = vld [vmem:[%s466 + $0x18] sm:$0xff]
        %v1580 = vld [vmem:[%s466 + $0x20] sm:$0xff]
        %v1581 = vld [vmem:[%s466 + $0x28] sm:$0xff]
        %v1582 = vld [vmem:[%s466 + $0x30] sm:$0xff]
        %v1583 = vld [vmem:[%s466 + $0x38] sm:$0xff]
        %v1584 = vld [vmem:[%s466 + $0x40] sm:$0x11]
        %v1585 = vld [vmem:[%s466 + $0x48] sm:$0x11]
        %v1586 = vld [vmem:[%s466 + $0x50] sm:$0x11]
        %v1587 = vld [vmem:[%s466 + $0x58] sm:$0x11]
        %v1588 = vld [vmem:[%s466 + $0x60] sm:$0x11]
        %v1589 = vld [vmem:[%s466 + $0x68] sm:$0x11]
        %v1590 = vld [vmem:[%s466 + $0x70] sm:$0x11]
        %v1591 = vld [vmem:[%s466 + $0x78] sm:$0x11]
        %v1608 = vunpack.c.l.b16 %v1576
        %v1609 = vunpack.c.h.b16 %v1576
        %v1610 = vunpack.c.l.b16 %v1577
        %v1611 = vunpack.c.h.b16 %v1577
        %v1612 = vunpack.c.l.b16 %v1578
        %v1613 = vunpack.c.h.b16 %v1578
        %v1614 = vunpack.c.l.b16 %v1579
        %v1615 = vunpack.c.h.b16 %v1579
        %v1616 = vunpack.c.l.b16 %v1580
        %v1617 = vunpack.c.h.b16 %v1580
        %v1618 = vunpack.c.l.b16 %v1581
        %v1619 = vunpack.c.h.b16 %v1581
        %v1620 = vunpack.c.l.b16 %v1582
        %v1621 = vunpack.c.h.b16 %v1582
        %v1622 = vunpack.c.l.b16 %v1583
        %v1623 = vunpack.c.h.b16 %v1583
        %v1624 = vunpack.c.l.b16 %v1584
        %v1625 = vunpack.c.h.b16 %v1584
        %v1626 = vunpack.c.l.b16 %v1585
        %v1627 = vunpack.c.h.b16 %v1585
        %v1628 = vunpack.c.l.b16 %v1586
        %v1629 = vunpack.c.h.b16 %v1586
        %v1630 = vunpack.c.l.b16 %v1587
        %v1631 = vunpack.c.h.b16 %v1587
        %v1632 = vunpack.c.l.b16 %v1588
        %v1633 = vunpack.c.h.b16 %v1588
        %v1634 = vunpack.c.l.b16 %v1589
        %v1635 = vunpack.c.h.b16 %v1589
        %v1636 = vunpack.c.l.b16 %v1590
        %v1637 = vunpack.c.h.b16 %v1590
        %v1638 = vunpack.c.l.b16 %v1591
        %v1639 = vunpack.c.h.b16 %v1591
        %v1640 = vpack.c.b16 %v1624, %v1608
        %v1641 = vpack.c.b16 %v1625, %v1609
        %v1642 = vpack.c.b16 %v1626, %v1610
        %v1643 = vpack.c.b16 %v1627, %v1611
        %v1644 = vpack.c.b16 %v1628, %v1612
        %v1645 = vpack.c.b16 %v1629, %v1613
        %v1646 = vpack.c.b16 %v1630, %v1614
        %v1647 = vpack.c.b16 %v1631, %v1615
        %v1648 = vpack.c.b16 %v1632, %v1616
        %v1649 = vpack.c.b16 %v1633, %v1617
        %v1650 = vpack.c.b16 %v1634, %v1618
        %v1651 = vpack.c.b16 %v1635, %v1619
        %v1652 = vpack.c.b16 %v1636, %v1620
        %v1653 = vpack.c.b16 %v1637, %v1621
        %v1654 = vpack.c.b16 %v1638, %v1622
        %v1655 = vpack.c.b16 %v1639, %v1623
        %vm1656 = vcmask 72704
        %v1658 = vsel %vm1656, %v1575, 0
        %vm1660 = vcmask 1044480
        %v1661 = vsel %vm1126, 4294967295, 65535
        %v1662 = vsel %vm1660, %v1661, 0
        %v1664 = vand.u32 %v1640, %v1662
        %v1667 = vand.u32 %v1641, %v1662
        %v1670 = vand.u32 %v1642, %v1662
        %v1673 = vand.u32 %v1643, %v1662
        %v1676 = vand.u32 %v1644, %v1662
        %v1679 = vand.u32 %v1645, %v1662
        %v1682 = vand.u32 %v1646, %v1662
        %v1685 = vand.u32 %v1647, %v1662
        %v1688 = vand.u32 %v1648, %v1662
        %v1691 = vand.u32 %v1649, %v1662
        %v1694 = vand.u32 %v1650, %v1662
        %v1697 = vand.u32 %v1651, %v1662
        %v1700 = vand.u32 %v1652, %v1662
        %v1703 = vand.u32 %v1653, %v1662
        %v1706 = vand.u32 %v1654, %v1662
        %v1709 = vand.u32 %v1655, %v1662
        %1711 = vmatprep.subr.bf16.mxu0 %v1667
        %1712 = vmatpush1.bf16.msra.mxu0 %v1664
        %1713 = vmatprep.subr.bf16.mxu0 0
        %1714 = vmatpush1.bf16.msra.mxu0 0
        %1715 = vmatprep.subr.bf16.mxu0 0
        %1716 = vmatpush1.bf16.msra.mxu0 0
        %1717 = vmatprep.subr.bf16.mxu0 0
        %1718 = vmatpush1.bf16.msra.mxu0 0
        %1719 = vmatprep.subr.bf16.mxu0 0
        %1720 = vmatpush1.bf16.msra.mxu0 0
        %1721 = vmatprep.subr.bf16.mxu0 0
        %1722 = vmatpush1.bf16.msra.mxu0 0
        %1723 = vmatprep.subr.bf16.mxu0 0
        %1724 = vmatpush1.bf16.msra.mxu0 0
        %1725 = vmatprep.subr.bf16.mxu0 0
        %1726 = vmatpush1.bf16.msra.mxu0 0
        %1727 = vmatprep.subr.bf16.mxu0 0
        %1728 = vmatpush1.bf16.msra.mxu0 0
        %1729 = vmatprep.subr.bf16.mxu0 0
        %1730 = vmatpush1.bf16.msra.mxu0 0
        %1731 = vmatprep.subr.bf16.mxu0 0
        %1732 = vmatpush1.bf16.msra.mxu0 0
        %1733 = vmatprep.subr.bf16.mxu0 0
        %1734 = vmatpush1.bf16.msra.mxu0 0
        %1735 = vmatprep.subr.bf16.mxu0 0
        %1736 = vmatpush1.bf16.msra.mxu0 0
        %1737 = vmatprep.subr.bf16.mxu0 0
        %1738 = vmatpush1.bf16.msra.mxu0 0
        %1739 = vmatprep.subr.bf16.mxu0 0
        %1740 = vmatpush1.bf16.msra.mxu0 0
        %1741 = vmatprep.subr.bf16.mxu0 0
        %1742 = vmatpush1.bf16.msra.mxu0 0
        %1743 = vmatprep.mubr.bf16.mxu0 0
        %1744 = vmatmul.mubr.bf16.gmra.mrb[0].mxu0 %v1658
        %v1745 = vpop.f32.mrb[0].mxu0
        %v1746 = vadd.f32 0.0, %v1745
        %v1747 = vpop.f32.mrb[0].mxu0
        %v1748 = vadd.f32 0.0, %v1747
        %v1749 = vpop.f32.mrb[0].mxu0
        %v1750 = vpop.f32.mrb[0].mxu0
        %1751 = vdwg.mxu0
        %1752 = vmatprep.subr.bf16.mxu0 %v1673
        %1753 = vmatpush1.bf16.msra.mxu0 %v1670
        %1754 = vmatprep.subr.bf16.mxu0 0
        %1755 = vmatpush1.bf16.msra.mxu0 0
        %1756 = vmatprep.subr.bf16.mxu0 0
        %1757 = vmatpush1.bf16.msra.mxu0 0
        %1758 = vmatprep.subr.bf16.mxu0 0
        %1759 = vmatpush1.bf16.msra.mxu0 0
        %1760 = vmatprep.subr.bf16.mxu0 0
        %1761 = vmatpush1.bf16.msra.mxu0 0
        %1762 = vmatprep.subr.bf16.mxu0 0
        %1763 = vmatpush1.bf16.msra.mxu0 0
        %1764 = vmatprep.subr.bf16.mxu0 0
        %1765 = vmatpush1.bf16.msra.mxu0 0
        %1766 = vmatprep.subr.bf16.mxu0 0
        %1767 = vmatpush1.bf16.msra.mxu0 0
        %1768 = vmatprep.subr.bf16.mxu0 0
        %1769 = vmatpush1.bf16.msra.mxu0 0
        %1770 = vmatprep.subr.bf16.mxu0 0
        %1771 = vmatpush1.bf16.msra.mxu0 0
        %1772 = vmatprep.subr.bf16.mxu0 0
        %1773 = vmatpush1.bf16.msra.mxu0 0
        %1774 = vmatprep.subr.bf16.mxu0 0
        %1775 = vmatpush1.bf16.msra.mxu0 0
        %1776 = vmatprep.subr.bf16.mxu0 0
        %1777 = vmatpush1.bf16.msra.mxu0 0
        %1778 = vmatprep.subr.bf16.mxu0 0
        %1779 = vmatpush1.bf16.msra.mxu0 0
        %1780 = vmatprep.subr.bf16.mxu0 0
        %1781 = vmatpush1.bf16.msra.mxu0 0
        %1782 = vmatprep.subr.bf16.mxu0 0
        %1783 = vmatpush1.bf16.msra.mxu0 0
        %1784 = vmatprep.mubr.bf16.mxu0 0
        %1785 = vmatmul.mubr.bf16.gmra.mrb[0].mxu0 %v1658
        %v1786 = vpop.f32.mrb[0].mxu0
        %v1787 = vadd.f32 0.0, %v1786
        %v1788 = vpop.f32.mrb[0].mxu0
        %v1789 = vadd.f32 0.0, %v1788
        %v1790 = vpop.f32.mrb[0].mxu0
        %v1791 = vpop.f32.mrb[0].mxu0
        %1792 = vdwg.mxu0
        %1793 = vmatprep.subr.bf16.mxu0 %v1679
        %1794 = vmatpush1.bf16.msra.mxu0 %v1676
        %1795 = vmatprep.subr.bf16.mxu0 0
        %1796 = vmatpush1.bf16.msra.mxu0 0
        %1797 = vmatprep.subr.bf16.mxu0 0
        %1798 = vmatpush1.bf16.msra.mxu0 0
        %1799 = vmatprep.subr.bf16.mxu0 0
        %1800 = vmatpush1.bf16.msra.mxu0 0
        %1801 = vmatprep.subr.bf16.mxu0 0
        %1802 = vmatpush1.bf16.msra.mxu0 0
        %1803 = vmatprep.subr.bf16.mxu0 0
        %1804 = vmatpush1.bf16.msra.mxu0 0
        %1805 = vmatprep.subr.bf16.mxu0 0
        %1806 = vmatpush1.bf16.msra.mxu0 0
        %1807 = vmatprep.subr.bf16.mxu0 0
        %1808 = vmatpush1.bf16.msra.mxu0 0
        %1809 = vmatprep.subr.bf16.mxu0 0
        %1810 = vmatpush1.bf16.msra.mxu0 0
        %1811 = vmatprep.subr.bf16.mxu0 0
        %1812 = vmatpush1.bf16.msra.mxu0 0
        %1813 = vmatprep.subr.bf16.mxu0 0
        %1814 = vmatpush1.bf16.msra.mxu0 0
        %1815 = vmatprep.subr.bf16.mxu0 0
        %1816 = vmatpush1.bf16.msra.mxu0 0
        %1817 = vmatprep.subr.bf16.mxu0 0
        %1818 = vmatpush1.bf16.msra.mxu0 0
        %1819 = vmatprep.subr.bf16.mxu0 0
        %1820 = vmatpush1.bf16.msra.mxu0 0
        %1821 = vmatprep.subr.bf16.mxu0 0
        %1822 = vmatpush1.bf16.msra.mxu0 0
        %1823 = vmatprep.subr.bf16.mxu0 0
        %1824 = vmatpush1.bf16.msra.mxu0 0
        %1825 = vmatprep.mubr.bf16.mxu0 0
        %1826 = vmatmul.mubr.bf16.gmra.mrb[0].mxu0 %v1658
        %v1827 = vpop.f32.mrb[0].mxu0
        %v1828 = vadd.f32 0.0, %v1827
        %v1829 = vpop.f32.mrb[0].mxu0
        %v1830 = vadd.f32 0.0, %v1829
        %v1831 = vpop.f32.mrb[0].mxu0
        %v1832 = vpop.f32.mrb[0].mxu0
        %1833 = vdwg.mxu0
        %1834 = vmatprep.subr.bf16.mxu0 %v1685
        %1835 = vmatpush1.bf16.msra.mxu0 %v1682
        %1836 = vmatprep.subr.bf16.mxu0 0
        %1837 = vmatpush1.bf16.msra.mxu0 0
        %1838 = vmatprep.subr.bf16.mxu0 0
        %1839 = vmatpush1.bf16.msra.mxu0 0
        %1840 = vmatprep.subr.bf16.mxu0 0
        %1841 = vmatpush1.bf16.msra.mxu0 0
        %1842 = vmatprep.subr.bf16.mxu0 0
        %1843 = vmatpush1.bf16.msra.mxu0 0
        %1844 = vmatprep.subr.bf16.mxu0 0
        %1845 = vmatpush1.bf16.msra.mxu0 0
        %1846 = vmatprep.subr.bf16.mxu0 0
        %1847 = vmatpush1.bf16.msra.mxu0 0
        %1848 = vmatprep.subr.bf16.mxu0 0
        %1849 = vmatpush1.bf16.msra.mxu0 0
        %1850 = vmatprep.subr.bf16.mxu0 0
        %1851 = vmatpush1.bf16.msra.mxu0 0
        %1852 = vmatprep.subr.bf16.mxu0 0
        %1853 = vmatpush1.bf16.msra.mxu0 0
        %1854 = vmatprep.subr.bf16.mxu0 0
        %1855 = vmatpush1.bf16.msra.mxu0 0
        %1856 = vmatprep.subr.bf16.mxu0 0
        %1857 = vmatpush1.bf16.msra.mxu0 0
        %1858 = vmatprep.subr.bf16.mxu0 0
        %1859 = vmatpush1.bf16.msra.mxu0 0
        %1860 = vmatprep.subr.bf16.mxu0 0
        %1861 = vmatpush1.bf16.msra.mxu0 0
        %1862 = vmatprep.subr.bf16.mxu0 0
        %1863 = vmatpush1.bf16.msra.mxu0 0
        %1864 = vmatprep.subr.bf16.mxu0 0
        %1865 = vmatpush1.bf16.msra.mxu0 0
        %1866 = vmatprep.mubr.bf16.mxu0 0
        %1867 = vmatmul.mubr.bf16.gmra.mrb[0].mxu0 %v1658
        %v1868 = vpop.f32.mrb[0].mxu0
        %v1869 = vadd.f32 0.0, %v1868
        %v1870 = vpop.f32.mrb[0].mxu0
        %v1871 = vadd.f32 0.0, %v1870
        %v1872 = vpop.f32.mrb[0].mxu0
        %v1873 = vpop.f32.mrb[0].mxu0
        %1874 = vdwg.mxu0
        %1875 = vmatprep.subr.bf16.mxu0 %v1691
        %1876 = vmatpush1.bf16.msra.mxu0 %v1688
        %1877 = vmatprep.subr.bf16.mxu0 0
        %1878 = vmatpush1.bf16.msra.mxu0 0
        %1879 = vmatprep.subr.bf16.mxu0 0
        %1880 = vmatpush1.bf16.msra.mxu0 0
        %1881 = vmatprep.subr.bf16.mxu0 0
        %1882 = vmatpush1.bf16.msra.mxu0 0
        %1883 = vmatprep.subr.bf16.mxu0 0
        %1884 = vmatpush1.bf16.msra.mxu0 0
        %1885 = vmatprep.subr.bf16.mxu0 0
        %1886 = vmatpush1.bf16.msra.mxu0 0
        %1887 = vmatprep.subr.bf16.mxu0 0
        %1888 = vmatpush1.bf16.msra.mxu0 0
        %1889 = vmatprep.subr.bf16.mxu0 0
        %1890 = vmatpush1.bf16.msra.mxu0 0
        %1891 = vmatprep.subr.bf16.mxu0 0
        %1892 = vmatpush1.bf16.msra.mxu0 0
        %1893 = vmatprep.subr.bf16.mxu0 0
        %1894 = vmatpush1.bf16.msra.mxu0 0
        %1895 = vmatprep.subr.bf16.mxu0 0
        %1896 = vmatpush1.bf16.msra.mxu0 0
        %1897 = vmatprep.subr.bf16.mxu0 0
        %1898 = vmatpush1.bf16.msra.mxu0 0
        %1899 = vmatprep.subr.bf16.mxu0 0
        %1900 = vmatpush1.bf16.msra.mxu0 0
        %1901 = vmatprep.subr.bf16.mxu0 0
        %1902 = vmatpush1.bf16.msra.mxu0 0
        %1903 = vmatprep.subr.bf16.mxu0 0
        %1904 = vmatpush1.bf16.msra.mxu0 0
        %1905 = vmatprep.subr.bf16.mxu0 0
        %1906 = vmatpush1.bf16.msra.mxu0 0
        %1907 = vmatprep.mubr.bf16.mxu0 0
        %1908 = vmatmul.mubr.bf16.gmra.mrb[0].mxu0 %v1658
        %v1909 = vpop.f32.mrb[0].mxu0
        %v1910 = vadd.f32 0.0, %v1909
        %v1911 = vpop.f32.mrb[0].mxu0
        %v1912 = vadd.f32 0.0, %v1911
        %v1913 = vpop.f32.mrb[0].mxu0
        %v1914 = vpop.f32.mrb[0].mxu0
        %1915 = vdwg.mxu0
        %1916 = vmatprep.subr.bf16.mxu0 %v1697
        %1917 = vmatpush1.bf16.msra.mxu0 %v1694
        %1918 = vmatprep.subr.bf16.mxu0 0
        %1919 = vmatpush1.bf16.msra.mxu0 0
        %1920 = vmatprep.subr.bf16.mxu0 0
        %1921 = vmatpush1.bf16.msra.mxu0 0
        %1922 = vmatprep.subr.bf16.mxu0 0
        %1923 = vmatpush1.bf16.msra.mxu0 0
        %1924 = vmatprep.subr.bf16.mxu0 0
        %1925 = vmatpush1.bf16.msra.mxu0 0
        %1926 = vmatprep.subr.bf16.mxu0 0
        %1927 = vmatpush1.bf16.msra.mxu0 0
        %1928 = vmatprep.subr.bf16.mxu0 0
        %1929 = vmatpush1.bf16.msra.mxu0 0
        %1930 = vmatprep.subr.bf16.mxu0 0
        %1931 = vmatpush1.bf16.msra.mxu0 0
        %1932 = vmatprep.subr.bf16.mxu0 0
        %1933 = vmatpush1.bf16.msra.mxu0 0
        %1934 = vmatprep.subr.bf16.mxu0 0
        %1935 = vmatpush1.bf16.msra.mxu0 0
        %1936 = vmatprep.subr.bf16.mxu0 0
        %1937 = vmatpush1.bf16.msra.mxu0 0
        %1938 = vmatprep.subr.bf16.mxu0 0
        %1939 = vmatpush1.bf16.msra.mxu0 0
        %1940 = vmatprep.subr.bf16.mxu0 0
        %1941 = vmatpush1.bf16.msra.mxu0 0
        %1942 = vmatprep.subr.bf16.mxu0 0
        %1943 = vmatpush1.bf16.msra.mxu0 0
        %1944 = vmatprep.subr.bf16.mxu0 0
        %1945 = vmatpush1.bf16.msra.mxu0 0
        %1946 = vmatprep.subr.bf16.mxu0 0
        %1947 = vmatpush1.bf16.msra.mxu0 0
        %1948 = vmatprep.mubr.bf16.mxu0 0
        %1949 = vmatmul.mubr.bf16.gmra.mrb[0].mxu0 %v1658
        %v1950 = vpop.f32.mrb[0].mxu0
        %v1951 = vadd.f32 0.0, %v1950
        %v1952 = vpop.f32.mrb[0].mxu0
        %v1953 = vadd.f32 0.0, %v1952
        %v1954 = vpop.f32.mrb[0].mxu0
        %v1955 = vpop.f32.mrb[0].mxu0
        %1956 = vdwg.mxu0
        %1957 = vmatprep.subr.bf16.mxu0 %v1703
        %1958 = vmatpush1.bf16.msra.mxu0 %v1700
        %1959 = vmatprep.subr.bf16.mxu0 0
        %1960 = vmatpush1.bf16.msra.mxu0 0
        %1961 = vmatprep.subr.bf16.mxu0 0
        %1962 = vmatpush1.bf16.msra.mxu0 0
        %1963 = vmatprep.subr.bf16.mxu0 0
        %1964 = vmatpush1.bf16.msra.mxu0 0
        %1965 = vmatprep.subr.bf16.mxu0 0
        %1966 = vmatpush1.bf16.msra.mxu0 0
        %1967 = vmatprep.subr.bf16.mxu0 0
        %1968 = vmatpush1.bf16.msra.mxu0 0
        %1969 = vmatprep.subr.bf16.mxu0 0
        %1970 = vmatpush1.bf16.msra.mxu0 0
        %1971 = vmatprep.subr.bf16.mxu0 0
        %1972 = vmatpush1.bf16.msra.mxu0 0
        %1973 = vmatprep.subr.bf16.mxu0 0
        %1974 = vmatpush1.bf16.msra.mxu0 0
        %1975 = vmatprep.subr.bf16.mxu0 0
        %1976 = vmatpush1.bf16.msra.mxu0 0
        %1977 = vmatprep.subr.bf16.mxu0 0
        %1978 = vmatpush1.bf16.msra.mxu0 0
        %1979 = vmatprep.subr.bf16.mxu0 0
        %1980 = vmatpush1.bf16.msra.mxu0 0
        %1981 = vmatprep.subr.bf16.mxu0 0
        %1982 = vmatpush1.bf16.msra.mxu0 0
        %1983 = vmatprep.subr.bf16.mxu0 0
        %1984 = vmatpush1.bf16.msra.mxu0 0
        %1985 = vmatprep.subr.bf16.mxu0 0
        %1986 = vmatpush1.bf16.msra.mxu0 0
        %1987 = vmatprep.subr.bf16.mxu0 0
        %1988 = vmatpush1.bf16.msra.mxu0 0
        %1989 = vmatprep.mubr.bf16.mxu0 0
        %1990 = vmatmul.mubr.bf16.gmra.mrb[0].mxu0 %v1658
        %v1991 = vpop.f32.mrb[0].mxu0
        %v1992 = vadd.f32 0.0, %v1991
        %v1993 = vpop.f32.mrb[0].mxu0
        %v1994 = vadd.f32 0.0, %v1993
        %v1995 = vpop.f32.mrb[0].mxu0
        %v1996 = vpop.f32.mrb[0].mxu0
        %1997 = vdwg.mxu0
        %1998 = vmatprep.subr.bf16.mxu0 %v1709
        %1999 = vmatpush1.bf16.msra.mxu0 %v1706
        %2000 = vmatprep.subr.bf16.mxu0 0
        %2001 = vmatpush1.bf16.msra.mxu0 0
        %2002 = vmatprep.subr.bf16.mxu0 0
        %2003 = vmatpush1.bf16.msra.mxu0 0
        %2004 = vmatprep.subr.bf16.mxu0 0
        %2005 = vmatpush1.bf16.msra.mxu0 0
        %2006 = vmatprep.subr.bf16.mxu0 0
        %2007 = vmatpush1.bf16.msra.mxu0 0
        %2008 = vmatprep.subr.bf16.mxu0 0
        %2009 = vmatpush1.bf16.msra.mxu0 0
        %2010 = vmatprep.subr.bf16.mxu0 0
        %2011 = vmatpush1.bf16.msra.mxu0 0
        %2012 = vmatprep.subr.bf16.mxu0 0
        %2013 = vmatpush1.bf16.msra.mxu0 0
        %2014 = vmatprep.subr.bf16.mxu0 0
        %2015 = vmatpush1.bf16.msra.mxu0 0
        %2016 = vmatprep.subr.bf16.mxu0 0
        %2017 = vmatpush1.bf16.msra.mxu0 0
        %2018 = vmatprep.subr.bf16.mxu0 0
        %2019 = vmatpush1.bf16.msra.mxu0 0
        %2020 = vmatprep.subr.bf16.mxu0 0
        %2021 = vmatpush1.bf16.msra.mxu0 0
        %2022 = vmatprep.subr.bf16.mxu0 0
        %2023 = vmatpush1.bf16.msra.mxu0 0
        %2024 = vmatprep.subr.bf16.mxu0 0
        %2025 = vmatpush1.bf16.msra.mxu0 0
        %2026 = vmatprep.subr.bf16.mxu0 0
        %2027 = vmatpush1.bf16.msra.mxu0 0
        %2028 = vmatprep.subr.bf16.mxu0 0
        %2029 = vmatpush1.bf16.msra.mxu0 0
        %2030 = vmatprep.mubr.bf16.mxu0 0
        %2031 = vmatmul.mubr.bf16.gmra.mrb[0].mxu0 %v1658
        %v2032 = vpop.f32.mrb[0].mxu0
        %v2033 = vadd.f32 0.0, %v2032
        %v2034 = vpop.f32.mrb[0].mxu0
        %v2035 = vadd.f32 0.0, %v2034
        %v2036 = vpop.f32.mrb[0].mxu0
        %v2037 = vpop.f32.mrb[0].mxu0
        %2038 = vdwg.mxu0
        %v2039 = vpack.c.bf16 %v1746, %v1746
        %v2040 = vpack.c.bf16 %v1748, %v1748
        %v2041 = vpack.c.bf16 %v1787, %v1787
        %v2042 = vpack.c.bf16 %v1789, %v1789
        %v2043 = vpack.c.bf16 %v1828, %v1828
        %v2044 = vpack.c.bf16 %v1830, %v1830
        %v2045 = vpack.c.bf16 %v1869, %v1869
        %v2046 = vpack.c.bf16 %v1871, %v1871
        %v2047 = vpack.c.bf16 %v1910, %v1910
        %v2048 = vpack.c.bf16 %v1912, %v1912
        %v2049 = vpack.c.bf16 %v1951, %v1951
        %v2050 = vpack.c.bf16 %v1953, %v1953
        %v2051 = vpack.c.bf16 %v1992, %v1992
        %v2052 = vpack.c.bf16 %v1994, %v1994
        %v2053 = vpack.c.bf16 %v2033, %v2033
        %v2054 = vpack.c.bf16 %v2035, %v2035
        %v2071 = vunpack.c.l.b16 %v2039
        %v2072 = vunpack.c.l.b16 %v2040
        %v2073 = vunpack.c.l.b16 %v2041
        %v2074 = vunpack.c.l.b16 %v2042
        %v2075 = vunpack.c.l.b16 %v2043
        %v2076 = vunpack.c.l.b16 %v2044
        %v2077 = vunpack.c.l.b16 %v2045
        %v2078 = vunpack.c.l.b16 %v2046
        %v2079 = vunpack.c.l.b16 %v2047
        %v2080 = vunpack.c.l.b16 %v2048
        %v2081 = vunpack.c.l.b16 %v2049
        %v2082 = vunpack.c.l.b16 %v2050
        %v2083 = vunpack.c.l.b16 %v2051
        %v2084 = vunpack.c.l.b16 %v2052
        %v2085 = vunpack.c.l.b16 %v2053
        %v2086 = vunpack.c.l.b16 %v2054
        %v2087 = vpack.c.b16 %v2072, %v2071
        %v2088 = vpack.c.b16 %v2074, %v2073
        %v2089 = vpack.c.b16 %v2076, %v2075
        %v2090 = vpack.c.b16 %v2078, %v2077
        %v2091 = vpack.c.b16 %v2080, %v2079
        %v2092 = vpack.c.b16 %v2082, %v2081
        %v2093 = vpack.c.b16 %v2084, %v2083
        %v2094 = vpack.c.b16 %v2086, %v2085
        %2103 = vst [vmem:[%s512] sm:$0xff] %v2087
        %2104 = vst [vmem:[%s512 + $0x8] sm:$0xff] %v2088
        %2105 = vst [vmem:[%s512 + $0x10] sm:$0xff] %v2089
        %2106 = vst [vmem:[%s512 + $0x18] sm:$0xff] %v2090
        %2107 = vst [vmem:[%s512 + $0x20] sm:$0xff] %v2091
        %2108 = vst [vmem:[%s512 + $0x28] sm:$0xff] %v2092
        %2109 = vst [vmem:[%s512 + $0x30] sm:$0xff] %v2093
        %2110 = vst [vmem:[%s512 + $0x38] sm:$0xff] %v2094
        %s2111 = sand.u32 %s267, 1
        %s2112 = scalar_lea.sflag [#allocation4], %s2111
        %s2113 = sand.u32 %s267, 1
        %s2114 = smul.addr %s2113, 64
        %s2115 = scalar_lea.vmem [#allocation12], %s2114
        %s2116 = sand.u32 %s295, 1
        %s2117 = scalar_lea.sflag [#allocation14], %s2116
        %s2118 = sand.u32 %s295, 1
        %s2119 = smul.addr %s2118, 64
        %s2120 = scalar_lea.vmem [#allocation13], %s2119
        // Predicated region
        $region81: #{tpu_custom_call.1} parent=55 // pred_check
          %p2121 = pneg %p277
        $region82: #{tpu_custom_call.1} parent=55 // pred_check_branch
          %2123 = sbr.rel (%p2121) target = $region84
        $region83: #{tpu_custom_call.1} parent=55 // pred_region
          %s2124 = smul.u32 16, %s36
          %s2126 = ssub.s32 1024, 1024
          %2127 = vsyncadd %s2112, %s2126
          %s2128 = smul.addr %s35, 32
          %s2129 = sadd.s32 %s2124, %s2128
          %s2130 = smul.addr %s2129, 64
          %s2131 = scalar_lea.hbm %s9, %s2130
          %s2133 = sshll.u32 %s2115, 4
          %s2134 = int_to_ptr.vmem [resolvable:$true] %s2133
          %2136 = dma.vmem_to_hbm [thread:$0]  %s2134, 1024, %s2131, %s2112
        $region84: #{tpu_custom_call.1} parent=55 // pred_fallthru
          _
        // Predicated region
        $region85: #{tpu_custom_call.1} parent=55 // pred_check
          %p2137 = pneg %p305
        $region86: #{tpu_custom_call.1} parent=55 // pred_check_branch
          %2139 = sbr.rel (%p2137) target = $region88
        $region87: #{tpu_custom_call.1} parent=55 // pred_region
          %s2140 = smul.u32 16, %s36
          %s2142 = ssub.s32 1024, 1024
          %2143 = vsyncadd %s2117, %s2142
          %s2144 = smul.addr %s35, 32
          %s2145 = sadd.s32 %s2140, %s2144
          %s2146 = smul.addr %s2145, 64
          %s2147 = scalar_lea.hbm %s10, %s2146
          %s2149 = sshll.u32 %s2120, 4
          %s2150 = int_to_ptr.vmem [resolvable:$true] %s2149
          %2152 = dma.vmem_to_hbm [thread:$0]  %s2150, 1024, %s2147, %s2117
        $region88: #{tpu_custom_call.1} parent=55 // pred_fallthru
          _
      $region56: #{tpu_custom_call.1} parent=5 // pred_fallthru
        _
      %p2153 = scmp.le.s32.totalorder 2, %s26
      // Predicated region
      $region89: #{tpu_custom_call.1} parent=5 // pred_check
        %p2154 = pneg %p2153
      $region90: #{tpu_custom_call.1} parent=5 // pred_check_branch
        %2156 = sbr.rel (%p2154) target = $region92
      $region91: #{tpu_custom_call.1} parent=5 // pred_region
        %s2157 = ssub.s32 %s26, 2
        // Predicated region
        $region93: #{tpu_custom_call.1} parent=91 // pred_check
          %p2158 = pneg %p283
        $region94: #{tpu_custom_call.1} parent=91 // pred_check_branch
          %2160 = sbr.rel (%p2158) target = $region96
        $region95: #{tpu_custom_call.1} parent=91 // pred_region
          %s2161 = sand.u32 %s268, 1
          %s2162 = scalar_lea.sflag [#allocation4], %s2161
          %s2163 = sand.u32 %s268, 1
          %s2164 = smul.addr %s2163, 64
          %s2165 = scalar_lea.vmem [#allocation12], %s2164
          %2166 = dma.done %s2162, 1024
        $region96: #{tpu_custom_call.1} parent=91 // pred_fallthru
          _
        // Predicated region
        $region97: #{tpu_custom_call.1} parent=91 // pred_check
          %p2167 = pneg %p311
        $region98: #{tpu_custom_call.1} parent=91 // pred_check_branch
          %2169 = sbr.rel (%p2167) target = $region100
        $region99: #{tpu_custom_call.1} parent=91 // pred_region
          %s2170 = sand.u32 %s296, 1
          %s2171 = scalar_lea.sflag [#allocation14], %s2170
          %s2172 = sand.u32 %s296, 1
          %s2173 = smul.addr %s2172, 64
          %s2174 = scalar_lea.vmem [#allocation13], %s2173
          %2175 = dma.done %s2171, 1024
        $region100: #{tpu_custom_call.1} parent=91 // pred_fallthru
          _
      $region92: #{tpu_custom_call.1} parent=5 // pred_fallthru
        _
    $region6: #{tpu_custom_call.1} parent=1 // loop_footer
      %s30 = sadd.s32 1, %s26
    $region7: #{tpu_custom_call.1} parent=1 // loop_footer_branch
      %25 = sbr.rel target = $region3
    $region8: #{tpu_custom_call.1} parent=1 // loop_exit
      _
    %2176 = vsyncpa [#allocation3], 1
    %s2177 = scalar_lea.sflag [#allocation3], 1
    %2178 = vsyncpa %s2177, 1
    %2179 = vsyncpa [#allocation6], 1
    %2180 = vsyncpa [#allocation9], 1
    %2181 = vsyncpa [#allocation4], 1
    %s2182 = scalar_lea.sflag [#allocation4], 1
    %2183 = vsyncpa %s2182, 1
    %2184 = vsyncpa [#allocation14], 1
    %s2185 = scalar_lea.sflag [#allocation14], 1
    %2186 = vsyncpa %s2185, 1

</llo_original>
